<compile_context>
chip_gen: v7x
topology: tpu7x:2x2x1
jax: 0.10.0
libtpu: 0.0.40
codegen_flags: <defaults>
</compile_context>

<pallas_src>
import jax
import jax.numpy as jnp
from jax import lax
from jax.experimental import pallas as pl
from jax.experimental.pallas import tpu as pltpu


def gru_decoder_kernel(emb_ref, h0_ref, wih_ref, whh_ref, bih_ref, bhh_ref,
                       out_ref, hN_ref, gi_ref):
    l = pl.program_id(0)
    TB, Hp = out_ref.shape
    B = h0_ref.shape[1]
    T = TB // B
    G = 3 * Hp

    wih = wih_ref[0]      # (Hp, 3Hp) bf16; gates lane-aligned at multiples of Hp
    whh = whh_ref[0]      # (Hp, 3Hp) bf16
    bih = bih_ref[0]      # (1, 3Hp)  f32
    # Hoist the bias broadcast out of the (unrolled) time loop (no CSE in JAX).
    bhh_b = jnp.broadcast_to(bhh_ref[0], (B, G))

    # ---- hoisted input-side GEMM over all timesteps (off the serial path) ----
    @pl.when(l == 0)
    def _():
        gi_ref[...] = jnp.dot(emb_ref[...], wih,
                              preferred_element_type=jnp.float32) + bih

    @pl.when(l > 0)
    def _():
        x_all = out_ref[...].astype(jnp.bfloat16)    # previous layer's outputs
        gi_ref[...] = jnp.dot(x_all, wih,
                              preferred_element_type=jnp.float32) + bih

    # ---- serial recurrence: one MXU matmul per step, h carried in vregs -----
    # T is small and static here, so fully unroll (LLO co-schedules across steps).
    # TODO(synk): for large T switch to lax.fori_loop(..., unroll=k).
    h = h0_ref[0]                                    # (B, Hp) f32
    for t in range(T):
        row = t * B
        gi = gi_ref[row:row + B, :]                  # (B, 3Hp) f32 (precomputed)
        gh = jnp.dot(h.astype(jnp.bfloat16), whh,
                     preferred_element_type=jnp.float32) + bhh_b
        r = jax.nn.sigmoid(gi[:, 0:Hp] + gh[:, 0:Hp])
        z = jax.nn.sigmoid(gi[:, Hp:2 * Hp] + gh[:, Hp:2 * Hp])
        n = jnp.tanh(gi[:, 2 * Hp:3 * Hp] + r * gh[:, 2 * Hp:3 * Hp])
        h = (1.0 - z) * n + z * h                    # PyTorch GRU update
        out_ref[row:row + B, :] = h                  # lane-dense (Hp = k*128) store

    hN_ref[0] = h


def _pack_gru_weight(w, H, Hp):
    """(L, 3H, H) PyTorch [r;z;n] -> (L, Hp, 3Hp) padded W^T.

    Gate g occupies columns [g*Hp, g*Hp+H); rows/cols beyond H are zero so the
    padded lanes stay inert through the recurrence."""
    L = w.shape[0]
    wt = jnp.transpose(w, (0, 2, 1))                 # (L, H, 3H)
    out = jnp.zeros((L, Hp, 3 * Hp), w.dtype)
    for g in range(3):
        out = out.at[:, :H, g * Hp:g * Hp + H].set(wt[:, :, g * H:(g + 1) * H])
    return out


def _pack_gru_bias(b, H, Hp):
    L = b.shape[0]
    out = jnp.zeros((L, 1, 3 * Hp), b.dtype)
    for g in range(3):
        out = out.at[:, 0, g * Hp:g * Hp + H].set(b[:, g * H:(g + 1) * H])
    return out


def decoder_s2s_forward(tgt, emb_table, h0, w_ih, w_hh, b_ih, b_hh):
    """tgt: (B, T) int32; emb_table: (V, E=H); h0: (L, B, H);
    w_ih/w_hh: (L, 3H, H); b_ih/b_hh: (L, 3H).
    Returns (outputs (B*T, H), hidden (L, B, H)) mirroring DecoderS2S.forward."""
    B, T = tgt.shape
    L, _, H = h0.shape
    Hp = ((H + 127) // 128) * 128                    # lane-align the hidden dim

    # Glue: embedding gather + layout/packing/padding (cheap, no recurrence).
    emb = jnp.take(emb_table, tgt, axis=0)                       # (B, T, H)
    emb_tm = jnp.transpose(emb, (1, 0, 2)).reshape(T * B, H)     # time-major rows
    emb_p = jnp.zeros((T * B, Hp), jnp.bfloat16).at[:, :H].set(
        emb_tm.astype(jnp.bfloat16))
    h0_p = jnp.zeros((L, B, Hp), jnp.float32).at[:, :, :H].set(h0)
    wih_p = _pack_gru_weight(w_ih, H, Hp).astype(jnp.bfloat16)   # (L, Hp, 3Hp)
    whh_p = _pack_gru_weight(w_hh, H, Hp).astype(jnp.bfloat16)
    bih_p = _pack_gru_bias(b_ih, H, Hp)                          # (L, 1, 3Hp) f32
    bhh_p = _pack_gru_bias(b_hh, H, Hp)

    out_p, hN_p = pl.pallas_call(
        gru_decoder_kernel,
        out_shape=(jax.ShapeDtypeStruct((T * B, Hp), jnp.float32),
                   jax.ShapeDtypeStruct((L, B, Hp), jnp.float32)),
        grid_spec=pltpu.PrefetchScalarGridSpec(
            num_scalar_prefetch=0,
            grid=(L,),
            in_specs=[
                pl.BlockSpec((T * B, Hp), lambda l: (0, 0)),          # emb (resident)
                pl.BlockSpec((1, B, Hp), lambda l: (l, 0, 0)),        # h0 per layer
                pl.BlockSpec((1, Hp, 3 * Hp), lambda l: (l, 0, 0)),   # W_ih^T packed
                pl.BlockSpec((1, Hp, 3 * Hp), lambda l: (l, 0, 0)),   # W_hh^T packed
                pl.BlockSpec((1, 1, 3 * Hp), lambda l: (l, 0, 0)),    # b_ih per layer
                pl.BlockSpec((1, 1, 3 * Hp), lambda l: (l, 0, 0)),    # b_hh per layer
            ],
            out_specs=(
                pl.BlockSpec((T * B, Hp), lambda l: (0, 0)),          # running/final sequence
                pl.BlockSpec((1, B, Hp), lambda l: (l, 0, 0)),        # final hidden per layer
            ),
            scratch_shapes=[pltpu.VMEM((T * B, 3 * Hp), jnp.float32)],  # hoisted gi
        ),
        compiler_params=pltpu.CompilerParams(
            # Layer axis carries the resident sequence buffer -> must stay sequential.
            dimension_semantics=("arbitrary",)),
    )(emb_p, h0_p, wih_p, whh_p, bih_p, bhh_p)

    # outputs.contiguous().view(B*T, -1) with batch_first ordering; strip padding.
    outputs = jnp.transpose(out_p.reshape(T, B, Hp)[:, :, :H], (1, 0, 2))
    outputs = outputs.reshape(B * T, H)
    hidden = hN_p[:, :, :H]
    return outputs, hidden


def gru_reference(emb, h0, w_ih, w_hh, b_ih, b_hh):
    """Pure-JAX (f32) reference of the multi-layer batch_first GRU."""
    B, T, H = emb.shape
    L = h0.shape[0]
    x = emb
    h_final = []
    for l in range(L):
        wih, whh, bih, bhh = w_ih[l], w_hh[l], b_ih[l], b_hh[l]

        def step(h, x_t):
            gi = x_t @ wih.T + bih
            gh = h @ whh.T + bhh
            i_r, i_z, i_n = jnp.split(gi, 3, axis=-1)
            h_r, h_z, h_n = jnp.split(gh, 3, axis=-1)
            r = jax.nn.sigmoid(i_r + h_r)
            z = jax.nn.sigmoid(i_z + h_z)
            n = jnp.tanh(i_n + r * h_n)
            h_new = (1.0 - z) * n + z * h
            return h_new, h_new

        hT, ys = lax.scan(step, h0[l], jnp.transpose(x, (1, 0, 2)))
        x = jnp.transpose(ys, (1, 0, 2))
        h_final.append(hT)
    return x.reshape(B * T, H), jnp.stack(h_final)


def orthogonal(key, n):
    a = jax.random.normal(key, (n, n), jnp.float32)
    q, r = jnp.linalg.qr(a)
    return q * jnp.sign(jnp.diag(r))[None, :]


if __name__ == "__main__":
    # Small shapes implied by the module: num_layers=2, hidden_dim=32,
    # embedding.emb_dim=32, vocab=50, batch=2, seq_len=8.
    B, T, H, L, V = 2, 8, 32, 2, 50
    key = jax.random.PRNGKey(0)
    k_emb, k_ih, k_hh, k_h0, k_tgt = jax.random.split(key, 5)

    # init_params(): weight_ih ~ N(0, 0.01); weight_hh orthogonal per H-block;
    # biases = 0. Embedding table: deterministic small normal.
    emb_table = 0.1 * jax.random.normal(k_emb, (V, H), jnp.float32)
    w_ih = 0.01 * jax.random.normal(k_ih, (L, 3 * H, H), jnp.float32)
    hh_keys = jax.random.split(k_hh, L * 3)
    w_hh = jnp.stack([
        jnp.concatenate([orthogonal(hh_keys[l * 3 + g], H) for g in range(3)], axis=0)
        for l in range(L)
    ])                                                    # (L, 3H, H)
    b_ih = jnp.zeros((L, 3 * H), jnp.float32)
    b_hh = jnp.zeros((L, 3 * H), jnp.float32)

    # state.hidden[0] for GRU: (num_layers, batch, hidden_dim) from init_states.
    h0 = 0.1 * jax.random.normal(k_h0, (L, B, H), jnp.float32)
    tgt = jax.random.randint(k_tgt, (B, T), 0, V, jnp.int32)

    fwd = jax.jit(decoder_s2s_forward)
    outputs, hidden = fwd(tgt, emb_table, h0, w_ih, w_hh, b_ih, b_hh)
    jax.block_until_ready(outputs)
    jax.block_until_ready(hidden)

    # Correctness check against a pure-f32 JAX reference.  The kernel uses bf16
    # MXU operands (f32 accumulation), so allow a correspondingly wider tolerance.
    emb = jnp.take(emb_table, tgt, axis=0)
    ref_out, ref_hid = gru_reference(emb, h0, w_ih, w_hh, b_ih, b_hh)
    assert outputs.shape == (B * T, H)
    assert hidden.shape == (L, B, H)
    assert jnp.allclose(outputs, ref_out, atol=2e-2, rtol=2e-2)
    assert jnp.allclose(hidden, ref_hid, atol=2e-2, rtol=2e-2)

    print("KERNEL_OK")
</pallas_src>

<mosaic_0001>
module attributes {stable_mosaic.version = 11 : i64} {
  func.func @gru_decoder_kernel(%arg0: i32, %arg1: memref<16x128xbf16, #tpu.memory_space<vmem>>, %arg2: memref<1x2x128xf32, #tpu.memory_space<vmem>>, %arg3: memref<1x128x384xbf16, #tpu.memory_space<vmem>>, %arg4: memref<1x128x384xbf16, #tpu.memory_space<vmem>>, %arg5: memref<1x1x384xf32, #tpu.memory_space<vmem>>, %arg6: memref<1x1x384xf32, #tpu.memory_space<vmem>>, %arg7: memref<16x128xf32, #tpu.memory_space<vmem>>, %arg8: memref<1x2x128xf32, #tpu.memory_space<vmem>>, %arg9: memref<16x384xf32, #tpu.memory_space<vmem>>) attributes {dimension_semantics = [#tpu.dimension_semantics<arbitrary>], iteration_bounds = array<i64: 2>, scalar_prefetch = 0 : i64, scratch_operands = 1 : i64, tpu.core_type = #tpu.core_type<tc>, window_params = [{pipeline_mode = #tpu.pipeline_mode<synchronous>, transform_indices = @transform_0, window_bounds = array<i64: 16, 128>}, {transform_indices = @transform_1, window_bounds = array<i64: 1, 2, 128>}, {transform_indices = @transform_2, window_bounds = array<i64: 1, 128, 384>}, {transform_indices = @transform_3, window_bounds = array<i64: 1, 128, 384>}, {transform_indices = @transform_4, window_bounds = array<i64: 1, 1, 384>}, {transform_indices = @transform_5, window_bounds = array<i64: 1, 1, 384>}, {pipeline_mode = #tpu.pipeline_mode<synchronous>, transform_indices = @transform_6, window_bounds = array<i64: 16, 128>}, {transform_indices = @transform_7, window_bounds = array<i64: 1, 2, 128>}]} {
    %c0 = arith.constant 0 : index
    %c0_0 = arith.constant 0 : index
    %c0_1 = arith.constant 0 : index
    %0 = vector.load %arg3[%c0, %c0_0, %c0_1] : memref<1x128x384xbf16, #tpu.memory_space<vmem>>, vector<1x128x384xbf16>
    %1 = vector.shape_cast %0 : vector<1x128x384xbf16> to vector<128x384xbf16>
    %c0_2 = arith.constant 0 : index
    %c0_3 = arith.constant 0 : index
    %c0_4 = arith.constant 0 : index
    %2 = vector.load %arg4[%c0_2, %c0_3, %c0_4] : memref<1x128x384xbf16, #tpu.memory_space<vmem>>, vector<1x128x384xbf16>
    %3 = vector.shape_cast %2 : vector<1x128x384xbf16> to vector<128x384xbf16>
    %c0_5 = arith.constant 0 : index
    %c0_6 = arith.constant 0 : index
    %c0_7 = arith.constant 0 : index
    %4 = vector.load %arg5[%c0_5, %c0_6, %c0_7] : memref<1x1x384xf32, #tpu.memory_space<vmem>>, vector<1x1x384xf32>
    %5 = vector.shape_cast %4 : vector<1x1x384xf32> to vector<1x384xf32>
    %c0_8 = arith.constant 0 : index
    %c0_9 = arith.constant 0 : index
    %c0_10 = arith.constant 0 : index
    %6 = vector.load %arg6[%c0_8, %c0_9, %c0_10] : memref<1x1x384xf32, #tpu.memory_space<vmem>>, vector<1x1x384xf32>
    %7 = vector.shape_cast %6 : vector<1x1x384xf32> to vector<1x384xf32>
    %8 = vector.shape_cast %7 : vector<1x384xf32> to vector<1x384xf32>
    %9 = vector.broadcast %8 : vector<1x384xf32> to vector<2x384xf32>
    %c0_i32 = arith.constant 0 : i32
    %10 = arith.cmpi eq, %arg0, %c0_i32 : i32
    %11 = arith.extui %10 : i1 to i32
    %c0_i32_11 = arith.constant 0 : i32
    %12 = arith.cmpi ne, %11, %c0_i32_11 : i32
    scf.if %12 {
      %c0_76 = arith.constant 0 : index
      %c0_77 = arith.constant 0 : index
      %269 = vector.load %arg1[%c0_76, %c0_77] : memref<16x128xbf16, #tpu.memory_space<vmem>>, vector<16x128xbf16>
      %cst_78 = arith.constant dense<0.000000e+00> : vector<16x384xf32>
      %270 = tpu.matmul %269, %1, %cst_78 {dimension_numbers = #tpu.dot_dimension_numbers<[1], [0], [0], [1], [0, 0, 1, 1], [], []>} : vector<16x128xbf16>, vector<128x384xbf16>, vector<16x384xf32> -> vector<16x384xf32>
      %271 = vector.broadcast %5 : vector<1x384xf32> to vector<16x384xf32>
      %272 = arith.addf %270, %271 : vector<16x384xf32>
      %c0_79 = arith.constant 0 : index
      %c0_80 = arith.constant 0 : index
      %273 = vector.load %arg9[%c0_79, %c0_80] : memref<16x384xf32, #tpu.memory_space<vmem>>, vector<16x384xf32>
      tpu.vector_store %arg9[%c0_79, %c0_80], %272 {strides = array<i32>} : memref<16x384xf32, #tpu.memory_space<vmem>>, vector<16x384xf32>,
    } else {
    }
    %c0_i32_12 = arith.constant 0 : i32
    %13 = arith.cmpi sgt, %arg0, %c0_i32_12 : i32
    %14 = arith.extui %13 : i1 to i32
    %c0_i32_13 = arith.constant 0 : i32
    %15 = arith.cmpi ne, %14, %c0_i32_13 : i32
    scf.if %15 {
      %c0_76 = arith.constant 0 : index
      %c0_77 = arith.constant 0 : index
      %269 = vector.load %arg7[%c0_76, %c0_77] : memref<16x128xf32, #tpu.memory_space<vmem>>, vector<16x128xf32>
      %270 = arith.truncf %269 : vector<16x128xf32> to vector<16x128xbf16>
      %cst_78 = arith.constant dense<0.000000e+00> : vector<16x384xf32>
      %271 = tpu.matmul %270, %1, %cst_78 {dimension_numbers = #tpu.dot_dimension_numbers<[1], [0], [0], [1], [0, 0, 1, 1], [], []>} : vector<16x128xbf16>, vector<128x384xbf16>, vector<16x384xf32> -> vector<16x384xf32>
      %272 = vector.broadcast %5 : vector<1x384xf32> to vector<16x384xf32>
      %273 = arith.addf %271, %272 : vector<16x384xf32>
      %c0_79 = arith.constant 0 : index
      %c0_80 = arith.constant 0 : index
      %274 = vector.load %arg9[%c0_79, %c0_80] : memref<16x384xf32, #tpu.memory_space<vmem>>, vector<16x384xf32>
      tpu.vector_store %arg9[%c0_79, %c0_80], %273 {strides = array<i32>} : memref<16x384xf32, #tpu.memory_space<vmem>>, vector<16x384xf32>,
    } else {
    }
    %c0_14 = arith.constant 0 : index
    %c0_15 = arith.constant 0 : index
    %c0_16 = arith.constant 0 : index
    %16 = vector.load %arg2[%c0_14, %c0_15, %c0_16] : memref<1x2x128xf32, #tpu.memory_space<vmem>>, vector<1x2x128xf32>
    %17 = vector.shape_cast %16 : vector<1x2x128xf32> to vector<2x128xf32>
    %c0_17 = arith.constant 0 : index
    %c0_18 = arith.constant 0 : index
    %18 = vector.load %arg9[%c0_17, %c0_18] : memref<16x384xf32, #tpu.memory_space<vmem>>, vector<2x384xf32>
    %19 = arith.truncf %17 : vector<2x128xf32> to vector<2x128xbf16>
    %cst = arith.constant dense<0.000000e+00> : vector<2x384xf32>
    %20 = tpu.matmul %19, %3, %cst {dimension_numbers = #tpu.dot_dimension_numbers<[1], [0], [0], [1], [0, 0, 1, 1], [], []>} : vector<2x128xbf16>, vector<128x384xbf16>, vector<2x384xf32> -> vector<2x384xf32>
    %21 = arith.addf %20, %9 : vector<2x384xf32>
    %22 = vector.extract_strided_slice %18 {offsets = [0, 0], sizes = [2, 128], strides = [1, 1]} : vector<2x384xf32> to vector<2x128xf32>
    %23 = vector.extract_strided_slice %21 {offsets = [0, 0], sizes = [2, 128], strides = [1, 1]} : vector<2x384xf32> to vector<2x128xf32>
    %24 = arith.addf %22, %23 : vector<2x128xf32>
    %25 = arith.negf %24 : vector<2x128xf32>
    %26 = math.exp %25 : vector<2x128xf32>
    %cst_19 = arith.constant 1.000000e+00 : f32
    %27 = vector.broadcast %cst_19 : f32 to vector<2x128xf32>
    %28 = arith.addf %27, %26 : vector<2x128xf32>
    %29 = arith.divf %27, %28 : vector<2x128xf32>
    %30 = vector.extract_strided_slice %18 {offsets = [0, 128], sizes = [2, 128], strides = [1, 1]} : vector<2x384xf32> to vector<2x128xf32>
    %31 = vector.extract_strided_slice %21 {offsets = [0, 128], sizes = [2, 128], strides = [1, 1]} : vector<2x384xf32> to vector<2x128xf32>
    %32 = arith.addf %30, %31 : vector<2x128xf32>
    %33 = arith.negf %32 : vector<2x128xf32>
    %34 = math.exp %33 : vector<2x128xf32>
    %cst_20 = arith.constant 1.000000e+00 : f32
    %35 = vector.broadcast %cst_20 : f32 to vector<2x128xf32>
    %36 = arith.addf %35, %34 : vector<2x128xf32>
    %37 = arith.divf %35, %36 : vector<2x128xf32>
    %38 = vector.extract_strided_slice %18 {offsets = [0, 256], sizes = [2, 128], strides = [1, 1]} : vector<2x384xf32> to vector<2x128xf32>
    %39 = vector.extract_strided_slice %21 {offsets = [0, 256], sizes = [2, 128], strides = [1, 1]} : vector<2x384xf32> to vector<2x128xf32>
    %40 = arith.mulf %29, %39 : vector<2x128xf32>
    %41 = arith.addf %38, %40 : vector<2x128xf32>
    %42 = math.tanh %41 : vector<2x128xf32>
    %cst_21 = arith.constant 1.000000e+00 : f32
    %43 = vector.broadcast %cst_21 : f32 to vector<2x128xf32>
    %44 = arith.subf %43, %37 : vector<2x128xf32>
    %45 = arith.mulf %44, %42 : vector<2x128xf32>
    %46 = arith.mulf %37, %17 : vector<2x128xf32>
    %47 = arith.addf %45, %46 : vector<2x128xf32>
    %c0_22 = arith.constant 0 : index
    %c0_23 = arith.constant 0 : index
    %48 = vector.load %arg7[%c0_22, %c0_23] : memref<16x128xf32, #tpu.memory_space<vmem>>, vector<2x128xf32>
    tpu.vector_store %arg7[%c0_22, %c0_23], %47 {strides = array<i32>} : memref<16x128xf32, #tpu.memory_space<vmem>>, vector<2x128xf32>,
    %c2 = arith.constant 2 : index
    %c0_24 = arith.constant 0 : index
    %49 = vector.load %arg9[%c2, %c0_24] : memref<16x384xf32, #tpu.memory_space<vmem>>, vector<2x384xf32>
    %50 = arith.truncf %47 : vector<2x128xf32> to vector<2x128xbf16>
    %cst_25 = arith.constant dense<0.000000e+00> : vector<2x384xf32>
    %51 = tpu.matmul %50, %3, %cst_25 {dimension_numbers = #tpu.dot_dimension_numbers<[1], [0], [0], [1], [0, 0, 1, 1], [], []>} : vector<2x128xbf16>, vector<128x384xbf16>, vector<2x384xf32> -> vector<2x384xf32>
    %52 = arith.addf %51, %9 : vector<2x384xf32>
    %53 = vector.extract_strided_slice %49 {offsets = [0, 0], sizes = [2, 128], strides = [1, 1]} : vector<2x384xf32> to vector<2x128xf32>
    %54 = vector.extract_strided_slice %52 {offsets = [0, 0], sizes = [2, 128], strides = [1, 1]} : vector<2x384xf32> to vector<2x128xf32>
    %55 = arith.addf %53, %54 : vector<2x128xf32>
    %56 = arith.negf %55 : vector<2x128xf32>
    %57 = math.exp %56 : vector<2x128xf32>
    %cst_26 = arith.constant 1.000000e+00 : f32
    %58 = vector.broadcast %cst_26 : f32 to vector<2x128xf32>
    %59 = arith.addf %58, %57 : vector<2x128xf32>
    %60 = arith.divf %58, %59 : vector<2x128xf32>
    %61 = vector.extract_strided_slice %49 {offsets = [0, 128], sizes = [2, 128], strides = [1, 1]} : vector<2x384xf32> to vector<2x128xf32>
    %62 = vector.extract_strided_slice %52 {offsets = [0, 128], sizes = [2, 128], strides = [1, 1]} : vector<2x384xf32> to vector<2x128xf32>
    %63 = arith.addf %61, %62 : vector<2x128xf32>
    %64 = arith.negf %63 : vector<2x128xf32>
    %65 = math.exp %64 : vector<2x128xf32>
    %cst_27 = arith.constant 1.000000e+00 : f32
    %66 = vector.broadcast %cst_27 : f32 to vector<2x128xf32>
    %67 = arith.addf %66, %65 : vector<2x128xf32>
    %68 = arith.divf %66, %67 : vector<2x128xf32>
    %69 = vector.extract_strided_slice %49 {offsets = [0, 256], sizes = [2, 128], strides = [1, 1]} : vector<2x384xf32> to vector<2x128xf32>
    %70 = vector.extract_strided_slice %52 {offsets = [0, 256], sizes = [2, 128], strides = [1, 1]} : vector<2x384xf32> to vector<2x128xf32>
    %71 = arith.mulf %60, %70 : vector<2x128xf32>
    %72 = arith.addf %69, %71 : vector<2x128xf32>
    %73 = math.tanh %72 : vector<2x128xf32>
    %cst_28 = arith.constant 1.000000e+00 : f32
    %74 = vector.broadcast %cst_28 : f32 to vector<2x128xf32>
    %75 = arith.subf %74, %68 : vector<2x128xf32>
    %76 = arith.mulf %75, %73 : vector<2x128xf32>
    %77 = arith.mulf %68, %47 : vector<2x128xf32>
    %78 = arith.addf %76, %77 : vector<2x128xf32>
    %c2_29 = arith.constant 2 : index
    %c0_30 = arith.constant 0 : index
    %79 = vector.load %arg7[%c2_29, %c0_30] : memref<16x128xf32, #tpu.memory_space<vmem>>, vector<2x128xf32>
    tpu.vector_store %arg7[%c2_29, %c0_30], %78 {strides = array<i32>} : memref<16x128xf32, #tpu.memory_space<vmem>>, vector<2x128xf32>,
    %c4 = arith.constant 4 : index
    %c0_31 = arith.constant 0 : index
    %80 = vector.load %arg9[%c4, %c0_31] : memref<16x384xf32, #tpu.memory_space<vmem>>, vector<2x384xf32>
    %81 = arith.truncf %78 : vector<2x128xf32> to vector<2x128xbf16>
    %cst_32 = arith.constant dense<0.000000e+00> : vector<2x384xf32>
    %82 = tpu.matmul %81, %3, %cst_32 {dimension_numbers = #tpu.dot_dimension_numbers<[1], [0], [0], [1], [0, 0, 1, 1], [], []>} : vector<2x128xbf16>, vector<128x384xbf16>, vector<2x384xf32> -> vector<2x384xf32>
    %83 = arith.addf %82, %9 : vector<2x384xf32>
    %84 = vector.extract_strided_slice %80 {offsets = [0, 0], sizes = [2, 128], strides = [1, 1]} : vector<2x384xf32> to vector<2x128xf32>
    %85 = vector.extract_strided_slice %83 {offsets = [0, 0], sizes = [2, 128], strides = [1, 1]} : vector<2x384xf32> to vector<2x128xf32>
    %86 = arith.addf %84, %85 : vector<2x128xf32>
    %87 = arith.negf %86 : vector<2x128xf32>
    %88 = math.exp %87 : vector<2x128xf32>
    %cst_33 = arith.constant 1.000000e+00 : f32
    %89 = vector.broadcast %cst_33 : f32 to vector<2x128xf32>
    %90 = arith.addf %89, %88 : vector<2x128xf32>
    %91 = arith.divf %89, %90 : vector<2x128xf32>
    %92 = vector.extract_strided_slice %80 {offsets = [0, 128], sizes = [2, 128], strides = [1, 1]} : vector<2x384xf32> to vector<2x128xf32>
    %93 = vector.extract_strided_slice %83 {offsets = [0, 128], sizes = [2, 128], strides = [1, 1]} : vector<2x384xf32> to vector<2x128xf32>
    %94 = arith.addf %92, %93 : vector<2x128xf32>
    %95 = arith.negf %94 : vector<2x128xf32>
    %96 = math.exp %95 : vector<2x128xf32>
    %cst_34 = arith.constant 1.000000e+00 : f32
    %97 = vector.broadcast %cst_34 : f32 to vector<2x128xf32>
    %98 = arith.addf %97, %96 : vector<2x128xf32>
    %99 = arith.divf %97, %98 : vector<2x128xf32>
    %100 = vector.extract_strided_slice %80 {offsets = [0, 256], sizes = [2, 128], strides = [1, 1]} : vector<2x384xf32> to vector<2x128xf32>
    %101 = vector.extract_strided_slice %83 {offsets = [0, 256], sizes = [2, 128], strides = [1, 1]} : vector<2x384xf32> to vector<2x128xf32>
    %102 = arith.mulf %91, %101 : vector<2x128xf32>
    %103 = arith.addf %100, %102 : vector<2x128xf32>
    %104 = math.tanh %103 : vector<2x128xf32>
    %cst_35 = arith.constant 1.000000e+00 : f32
    %105 = vector.broadcast %cst_35 : f32 to vector<2x128xf32>
    %106 = arith.subf %105, %99 : vector<2x128xf32>
    %107 = arith.mulf %106, %104 : vector<2x128xf32>
    %108 = arith.mulf %99, %78 : vector<2x128xf32>
    %109 = arith.addf %107, %108 : vector<2x128xf32>
    %c4_36 = arith.constant 4 : index
    %c0_37 = arith.constant 0 : index
    %110 = vector.load %arg7[%c4_36, %c0_37] : memref<16x128xf32, #tpu.memory_space<vmem>>, vector<2x128xf32>
    tpu.vector_store %arg7[%c4_36, %c0_37], %109 {strides = array<i32>} : memref<16x128xf32, #tpu.memory_space<vmem>>, vector<2x128xf32>,
    %c6 = arith.constant 6 : index
    %c0_38 = arith.constant 0 : index
    %111 = vector.load %arg9[%c6, %c0_38] : memref<16x384xf32, #tpu.memory_space<vmem>>, vector<2x384xf32>
    %112 = arith.truncf %109 : vector<2x128xf32> to vector<2x128xbf16>
    %cst_39 = arith.constant dense<0.000000e+00> : vector<2x384xf32>
    %113 = tpu.matmul %112, %3, %cst_39 {dimension_numbers = #tpu.dot_dimension_numbers<[1], [0], [0], [1], [0, 0, 1, 1], [], []>} : vector<2x128xbf16>, vector<128x384xbf16>, vector<2x384xf32> -> vector<2x384xf32>
    %114 = arith.addf %113, %9 : vector<2x384xf32>
    %115 = vector.extract_strided_slice %111 {offsets = [0, 0], sizes = [2, 128], strides = [1, 1]} : vector<2x384xf32> to vector<2x128xf32>
    %116 = vector.extract_strided_slice %114 {offsets = [0, 0], sizes = [2, 128], strides = [1, 1]} : vector<2x384xf32> to vector<2x128xf32>
    %117 = arith.addf %115, %116 : vector<2x128xf32>
    %118 = arith.negf %117 : vector<2x128xf32>
    %119 = math.exp %118 : vector<2x128xf32>
    %cst_40 = arith.constant 1.000000e+00 : f32
    %120 = vector.broadcast %cst_40 : f32 to vector<2x128xf32>
    %121 = arith.addf %120, %119 : vector<2x128xf32>
    %122 = arith.divf %120, %121 : vector<2x128xf32>
    %123 = vector.extract_strided_slice %111 {offsets = [0, 128], sizes = [2, 128], strides = [1, 1]} : vector<2x384xf32> to vector<2x128xf32>
    %124 = vector.extract_strided_slice %114 {offsets = [0, 128], sizes = [2, 128], strides = [1, 1]} : vector<2x384xf32> to vector<2x128xf32>
    %125 = arith.addf %123, %124 : vector<2x128xf32>
    %126 = arith.negf %125 : vector<2x128xf32>
    %127 = math.exp %126 : vector<2x128xf32>
    %cst_41 = arith.constant 1.000000e+00 : f32
    %128 = vector.broadcast %cst_41 : f32 to vector<2x128xf32>
    %129 = arith.addf %128, %127 : vector<2x128xf32>
    %130 = arith.divf %128, %129 : vector<2x128xf32>
    %131 = vector.extract_strided_slice %111 {offsets = [0, 256], sizes = [2, 128], strides = [1, 1]} : vector<2x384xf32> to vector<2x128xf32>
    %132 = vector.extract_strided_slice %114 {offsets = [0, 256], sizes = [2, 128], strides = [1, 1]} : vector<2x384xf32> to vector<2x128xf32>
    %133 = arith.mulf %122, %132 : vector<2x128xf32>
    %134 = arith.addf %131, %133 : vector<2x128xf32>
    %135 = math.tanh %134 : vector<2x128xf32>
    %cst_42 = arith.constant 1.000000e+00 : f32
    %136 = vector.broadcast %cst_42 : f32 to vector<2x128xf32>
    %137 = arith.subf %136, %130 : vector<2x128xf32>
    %138 = arith.mulf %137, %135 : vector<2x128xf32>
    %139 = arith.mulf %130, %109 : vector<2x128xf32>
    %140 = arith.addf %138, %139 : vector<2x128xf32>
    %c6_43 = arith.constant 6 : index
    %c0_44 = arith.constant 0 : index
    %141 = vector.load %arg7[%c6_43, %c0_44] : memref<16x128xf32, #tpu.memory_space<vmem>>, vector<2x128xf32>
    tpu.vector_store %arg7[%c6_43, %c0_44], %140 {strides = array<i32>} : memref<16x128xf32, #tpu.memory_space<vmem>>, vector<2x128xf32>,
    %c8 = arith.constant 8 : index
    %c0_45 = arith.constant 0 : index
    %142 = vector.load %arg9[%c8, %c0_45] : memref<16x384xf32, #tpu.memory_space<vmem>>, vector<2x384xf32>
    %143 = arith.truncf %140 : vector<2x128xf32> to vector<2x128xbf16>
    %cst_46 = arith.constant dense<0.000000e+00> : vector<2x384xf32>
    %144 = tpu.matmul %143, %3, %cst_46 {dimension_numbers = #tpu.dot_dimension_numbers<[1], [0], [0], [1], [0, 0, 1, 1], [], []>} : vector<2x128xbf16>, vector<128x384xbf16>, vector<2x384xf32> -> vector<2x384xf32>
    %145 = arith.addf %144, %9 : vector<2x384xf32>
    %146 = vector.extract_strided_slice %142 {offsets = [0, 0], sizes = [2, 128], strides = [1, 1]} : vector<2x384xf32> to vector<2x128xf32>
    %147 = vector.extract_strided_slice %145 {offsets = [0, 0], sizes = [2, 128], strides = [1, 1]} : vector<2x384xf32> to vector<2x128xf32>
    %148 = arith.addf %146, %147 : vector<2x128xf32>
    %149 = arith.negf %148 : vector<2x128xf32>
    %150 = math.exp %149 : vector<2x128xf32>
    %cst_47 = arith.constant 1.000000e+00 : f32
    %151 = vector.broadcast %cst_47 : f32 to vector<2x128xf32>
    %152 = arith.addf %151, %150 : vector<2x128xf32>
    %153 = arith.divf %151, %152 : vector<2x128xf32>
    %154 = vector.extract_strided_slice %142 {offsets = [0, 128], sizes = [2, 128], strides = [1, 1]} : vector<2x384xf32> to vector<2x128xf32>
    %155 = vector.extract_strided_slice %145 {offsets = [0, 128], sizes = [2, 128], strides = [1, 1]} : vector<2x384xf32> to vector<2x128xf32>
    %156 = arith.addf %154, %155 : vector<2x128xf32>
    %157 = arith.negf %156 : vector<2x128xf32>
    %158 = math.exp %157 : vector<2x128xf32>
    %cst_48 = arith.constant 1.000000e+00 : f32
    %159 = vector.broadcast %cst_48 : f32 to vector<2x128xf32>
    %160 = arith.addf %159, %158 : vector<2x128xf32>
    %161 = arith.divf %159, %160 : vector<2x128xf32>
    %162 = vector.extract_strided_slice %142 {offsets = [0, 256], sizes = [2, 128], strides = [1, 1]} : vector<2x384xf32> to vector<2x128xf32>
    %163 = vector.extract_strided_slice %145 {offsets = [0, 256], sizes = [2, 128], strides = [1, 1]} : vector<2x384xf32> to vector<2x128xf32>
    %164 = arith.mulf %153, %163 : vector<2x128xf32>
    %165 = arith.addf %162, %164 : vector<2x128xf32>
    %166 = math.tanh %165 : vector<2x128xf32>
    %cst_49 = arith.constant 1.000000e+00 : f32
    %167 = vector.broadcast %cst_49 : f32 to vector<2x128xf32>
    %168 = arith.subf %167, %161 : vector<2x128xf32>
    %169 = arith.mulf %168, %166 : vector<2x128xf32>
    %170 = arith.mulf %161, %140 : vector<2x128xf32>
    %171 = arith.addf %169, %170 : vector<2x128xf32>
    %c8_50 = arith.constant 8 : index
    %c0_51 = arith.constant 0 : index
    %172 = vector.load %arg7[%c8_50, %c0_51] : memref<16x128xf32, #tpu.memory_space<vmem>>, vector<2x128xf32>
    tpu.vector_store %arg7[%c8_50, %c0_51], %171 {strides = array<i32>} : memref<16x128xf32, #tpu.memory_space<vmem>>, vector<2x128xf32>,
    %c10 = arith.constant 10 : index
    %c0_52 = arith.constant 0 : index
    %173 = vector.load %arg9[%c10, %c0_52] : memref<16x384xf32, #tpu.memory_space<vmem>>, vector<2x384xf32>
    %174 = arith.truncf %171 : vector<2x128xf32> to vector<2x128xbf16>
    %cst_53 = arith.constant dense<0.000000e+00> : vector<2x384xf32>
    %175 = tpu.matmul %174, %3, %cst_53 {dimension_numbers = #tpu.dot_dimension_numbers<[1], [0], [0], [1], [0, 0, 1, 1], [], []>} : vector<2x128xbf16>, vector<128x384xbf16>, vector<2x384xf32> -> vector<2x384xf32>
    %176 = arith.addf %175, %9 : vector<2x384xf32>
    %177 = vector.extract_strided_slice %173 {offsets = [0, 0], sizes = [2, 128], strides = [1, 1]} : vector<2x384xf32> to vector<2x128xf32>
    %178 = vector.extract_strided_slice %176 {offsets = [0, 0], sizes = [2, 128], strides = [1, 1]} : vector<2x384xf32> to vector<2x128xf32>
    %179 = arith.addf %177, %178 : vector<2x128xf32>
    %180 = arith.negf %179 : vector<2x128xf32>
    %181 = math.exp %180 : vector<2x128xf32>
    %cst_54 = arith.constant 1.000000e+00 : f32
    %182 = vector.broadcast %cst_54 : f32 to vector<2x128xf32>
    %183 = arith.addf %182, %181 : vector<2x128xf32>
    %184 = arith.divf %182, %183 : vector<2x128xf32>
    %185 = vector.extract_strided_slice %173 {offsets = [0, 128], sizes = [2, 128], strides = [1, 1]} : vector<2x384xf32> to vector<2x128xf32>
    %186 = vector.extract_strided_slice %176 {offsets = [0, 128], sizes = [2, 128], strides = [1, 1]} : vector<2x384xf32> to vector<2x128xf32>
    %187 = arith.addf %185, %186 : vector<2x128xf32>
    %188 = arith.negf %187 : vector<2x128xf32>
    %189 = math.exp %188 : vector<2x128xf32>
    %cst_55 = arith.constant 1.000000e+00 : f32
    %190 = vector.broadcast %cst_55 : f32 to vector<2x128xf32>
    %191 = arith.addf %190, %189 : vector<2x128xf32>
    %192 = arith.divf %190, %191 : vector<2x128xf32>
    %193 = vector.extract_strided_slice %173 {offsets = [0, 256], sizes = [2, 128], strides = [1, 1]} : vector<2x384xf32> to vector<2x128xf32>
    %194 = vector.extract_strided_slice %176 {offsets = [0, 256], sizes = [2, 128], strides = [1, 1]} : vector<2x384xf32> to vector<2x128xf32>
    %195 = arith.mulf %184, %194 : vector<2x128xf32>
    %196 = arith.addf %193, %195 : vector<2x128xf32>
    %197 = math.tanh %196 : vector<2x128xf32>
    %cst_56 = arith.constant 1.000000e+00 : f32
    %198 = vector.broadcast %cst_56 : f32 to vector<2x128xf32>
    %199 = arith.subf %198, %192 : vector<2x128xf32>
    %200 = arith.mulf %199, %197 : vector<2x128xf32>
    %201 = arith.mulf %192, %171 : vector<2x128xf32>
    %202 = arith.addf %200, %201 : vector<2x128xf32>
    %c10_57 = arith.constant 10 : index
    %c0_58 = arith.constant 0 : index
    %203 = vector.load %arg7[%c10_57, %c0_58] : memref<16x128xf32, #tpu.memory_space<vmem>>, vector<2x128xf32>
    tpu.vector_store %arg7[%c10_57, %c0_58], %202 {strides = array<i32>} : memref<16x128xf32, #tpu.memory_space<vmem>>, vector<2x128xf32>,
    %c12 = arith.constant 12 : index
    %c0_59 = arith.constant 0 : index
    %204 = vector.load %arg9[%c12, %c0_59] : memref<16x384xf32, #tpu.memory_space<vmem>>, vector<2x384xf32>
    %205 = arith.truncf %202 : vector<2x128xf32> to vector<2x128xbf16>
    %cst_60 = arith.constant dense<0.000000e+00> : vector<2x384xf32>
    %206 = tpu.matmul %205, %3, %cst_60 {dimension_numbers = #tpu.dot_dimension_numbers<[1], [0], [0], [1], [0, 0, 1, 1], [], []>} : vector<2x128xbf16>, vector<128x384xbf16>, vector<2x384xf32> -> vector<2x384xf32>
    %207 = arith.addf %206, %9 : vector<2x384xf32>
    %208 = vector.extract_strided_slice %204 {offsets = [0, 0], sizes = [2, 128], strides = [1, 1]} : vector<2x384xf32> to vector<2x128xf32>
    %209 = vector.extract_strided_slice %207 {offsets = [0, 0], sizes = [2, 128], strides = [1, 1]} : vector<2x384xf32> to vector<2x128xf32>
    %210 = arith.addf %208, %209 : vector<2x128xf32>
    %211 = arith.negf %210 : vector<2x128xf32>
    %212 = math.exp %211 : vector<2x128xf32>
    %cst_61 = arith.constant 1.000000e+00 : f32
    %213 = vector.broadcast %cst_61 : f32 to vector<2x128xf32>
    %214 = arith.addf %213, %212 : vector<2x128xf32>
    %215 = arith.divf %213, %214 : vector<2x128xf32>
    %216 = vector.extract_strided_slice %204 {offsets = [0, 128], sizes = [2, 128], strides = [1, 1]} : vector<2x384xf32> to vector<2x128xf32>
    %217 = vector.extract_strided_slice %207 {offsets = [0, 128], sizes = [2, 128], strides = [1, 1]} : vector<2x384xf32> to vector<2x128xf32>
    %218 = arith.addf %216, %217 : vector<2x128xf32>
    %219 = arith.negf %218 : vector<2x128xf32>
    %220 = math.exp %219 : vector<2x128xf32>
    %cst_62 = arith.constant 1.000000e+00 : f32
    %221 = vector.broadcast %cst_62 : f32 to vector<2x128xf32>
    %222 = arith.addf %221, %220 : vector<2x128xf32>
    %223 = arith.divf %221, %222 : vector<2x128xf32>
    %224 = vector.extract_strided_slice %204 {offsets = [0, 256], sizes = [2, 128], strides = [1, 1]} : vector<2x384xf32> to vector<2x128xf32>
    %225 = vector.extract_strided_slice %207 {offsets = [0, 256], sizes = [2, 128], strides = [1, 1]} : vector<2x384xf32> to vector<2x128xf32>
    %226 = arith.mulf %215, %225 : vector<2x128xf32>
    %227 = arith.addf %224, %226 : vector<2x128xf32>
    %228 = math.tanh %227 : vector<2x128xf32>
    %cst_63 = arith.constant 1.000000e+00 : f32
    %229 = vector.broadcast %cst_63 : f32 to vector<2x128xf32>
    %230 = arith.subf %229, %223 : vector<2x128xf32>
    %231 = arith.mulf %230, %228 : vector<2x128xf32>
    %232 = arith.mulf %223, %202 : vector<2x128xf32>
    %233 = arith.addf %231, %232 : vector<2x128xf32>
    %c12_64 = arith.constant 12 : index
    %c0_65 = arith.constant 0 : index
    %234 = vector.load %arg7[%c12_64, %c0_65] : memref<16x128xf32, #tpu.memory_space<vmem>>, vector<2x128xf32>
    tpu.vector_store %arg7[%c12_64, %c0_65], %233 {strides = array<i32>} : memref<16x128xf32, #tpu.memory_space<vmem>>, vector<2x128xf32>,
    %c14 = arith.constant 14 : index
    %c0_66 = arith.constant 0 : index
    %235 = vector.load %arg9[%c14, %c0_66] : memref<16x384xf32, #tpu.memory_space<vmem>>, vector<2x384xf32>
    %236 = arith.truncf %233 : vector<2x128xf32> to vector<2x128xbf16>
    %cst_67 = arith.constant dense<0.000000e+00> : vector<2x384xf32>
    %237 = tpu.matmul %236, %3, %cst_67 {dimension_numbers = #tpu.dot_dimension_numbers<[1], [0], [0], [1], [0, 0, 1, 1], [], []>} : vector<2x128xbf16>, vector<128x384xbf16>, vector<2x384xf32> -> vector<2x384xf32>
    %238 = arith.addf %237, %9 : vector<2x384xf32>
    %239 = vector.extract_strided_slice %235 {offsets = [0, 0], sizes = [2, 128], strides = [1, 1]} : vector<2x384xf32> to vector<2x128xf32>
    %240 = vector.extract_strided_slice %238 {offsets = [0, 0], sizes = [2, 128], strides = [1, 1]} : vector<2x384xf32> to vector<2x128xf32>
    %241 = arith.addf %239, %240 : vector<2x128xf32>
    %242 = arith.negf %241 : vector<2x128xf32>
    %243 = math.exp %242 : vector<2x128xf32>
    %cst_68 = arith.constant 1.000000e+00 : f32
    %244 = vector.broadcast %cst_68 : f32 to vector<2x128xf32>
    %245 = arith.addf %244, %243 : vector<2x128xf32>
    %246 = arith.divf %244, %245 : vector<2x128xf32>
    %247 = vector.extract_strided_slice %235 {offsets = [0, 128], sizes = [2, 128], strides = [1, 1]} : vector<2x384xf32> to vector<2x128xf32>
    %248 = vector.extract_strided_slice %238 {offsets = [0, 128], sizes = [2, 128], strides = [1, 1]} : vector<2x384xf32> to vector<2x128xf32>
    %249 = arith.addf %247, %248 : vector<2x128xf32>
    %250 = arith.negf %249 : vector<2x128xf32>
    %251 = math.exp %250 : vector<2x128xf32>
    %cst_69 = arith.constant 1.000000e+00 : f32
    %252 = vector.broadcast %cst_69 : f32 to vector<2x128xf32>
    %253 = arith.addf %252, %251 : vector<2x128xf32>
    %254 = arith.divf %252, %253 : vector<2x128xf32>
    %255 = vector.extract_strided_slice %235 {offsets = [0, 256], sizes = [2, 128], strides = [1, 1]} : vector<2x384xf32> to vector<2x128xf32>
    %256 = vector.extract_strided_slice %238 {offsets = [0, 256], sizes = [2, 128], strides = [1, 1]} : vector<2x384xf32> to vector<2x128xf32>
    %257 = arith.mulf %246, %256 : vector<2x128xf32>
    %258 = arith.addf %255, %257 : vector<2x128xf32>
    %259 = math.tanh %258 : vector<2x128xf32>
    %cst_70 = arith.constant 1.000000e+00 : f32
    %260 = vector.broadcast %cst_70 : f32 to vector<2x128xf32>
    %261 = arith.subf %260, %254 : vector<2x128xf32>
    %262 = arith.mulf %261, %259 : vector<2x128xf32>
    %263 = arith.mulf %254, %233 : vector<2x128xf32>
    %264 = arith.addf %262, %263 : vector<2x128xf32>
    %c14_71 = arith.constant 14 : index
    %c0_72 = arith.constant 0 : index
    %265 = vector.load %arg7[%c14_71, %c0_72] : memref<16x128xf32, #tpu.memory_space<vmem>>, vector<2x128xf32>
    tpu.vector_store %arg7[%c14_71, %c0_72], %264 {strides = array<i32>} : memref<16x128xf32, #tpu.memory_space<vmem>>, vector<2x128xf32>,
    %c0_73 = arith.constant 0 : index
    %c0_74 = arith.constant 0 : index
    %c0_75 = arith.constant 0 : index
    %266 = vector.load %arg8[%c0_73, %c0_74, %c0_75] : memref<1x2x128xf32, #tpu.memory_space<vmem>>, vector<1x2x128xf32>
    %267 = vector.shape_cast %266 : vector<1x2x128xf32> to vector<2x128xf32>
    %268 = vector.shape_cast %264 : vector<2x128xf32> to vector<1x2x128xf32>
    tpu.vector_store %arg8[%c0_73, %c0_74, %c0_75], %268 {strides = array<i32>} : memref<1x2x128xf32, #tpu.memory_space<vmem>>, vector<1x2x128xf32>,
    return
  }
  func.func @transform_0(%arg0: i32) -> (i32, i32) {
    %c0_i32 = arith.constant 0 : i32
    %c0_i32_0 = arith.constant 0 : i32
    %c0_i32_1 = arith.constant 0 : i32
    return %c0_i32, %c0_i32_0 : i32, i32
  }
  func.func @transform_1(%arg0: i32) -> (i32, i32, i32) {
    %c0_i32 = arith.constant 0 : i32
    %c0_i32_0 = arith.constant 0 : i32
    %c0_i32_1 = arith.constant 0 : i32
    return %arg0, %c0_i32, %c0_i32_0 : i32, i32, i32
  }
  func.func @transform_2(%arg0: i32) -> (i32, i32, i32) {
    %c0_i32 = arith.constant 0 : i32
    %c0_i32_0 = arith.constant 0 : i32
    %c0_i32_1 = arith.constant 0 : i32
    return %arg0, %c0_i32, %c0_i32_0 : i32, i32, i32
  }
  func.func @transform_3(%arg0: i32) -> (i32, i32, i32) {
    %c0_i32 = arith.constant 0 : i32
    %c0_i32_0 = arith.constant 0 : i32
    %c0_i32_1 = arith.constant 0 : i32
    return %arg0, %c0_i32, %c0_i32_0 : i32, i32, i32
  }
  func.func @transform_4(%arg0: i32) -> (i32, i32, i32) {
    %c0_i32 = arith.constant 0 : i32
    %c0_i32_0 = arith.constant 0 : i32
    %c0_i32_1 = arith.constant 0 : i32
    return %arg0, %c0_i32, %c0_i32_0 : i32, i32, i32
  }
  func.func @transform_5(%arg0: i32) -> (i32, i32, i32) {
    %c0_i32 = arith.constant 0 : i32
    %c0_i32_0 = arith.constant 0 : i32
    %c0_i32_1 = arith.constant 0 : i32
    return %arg0, %c0_i32, %c0_i32_0 : i32, i32, i32
  }
  func.func @transform_6(%arg0: i32) -> (i32, i32) {
    %c0_i32 = arith.constant 0 : i32
    %c0_i32_0 = arith.constant 0 : i32
    %c0_i32_1 = arith.constant 0 : i32
    return %c0_i32, %c0_i32_0 : i32, i32
  }
  func.func @transform_7(%arg0: i32) -> (i32, i32, i32) {
    %c0_i32 = arith.constant 0 : i32
    %c0_i32_0 = arith.constant 0 : i32
    %c0_i32_1 = arith.constant 0 : i32
    return %arg0, %c0_i32, %c0_i32_0 : i32, i32, i32
  }
}

</mosaic_0001>

<llo_original>
// kernel: decoder_s2s_forward.1
$region0: #{decoder_s2s_forward.1}
  #allocation0 [shape = 'u32[]', space=smem, size = 0x4, offset = 0x4, fixed_abs, tag = 'smem constant byte address 0x4 - core index']
  #allocation1 [shape = 'u32[144,128]{1,0:T(1,128)}', space=vmem, size = 0x12000, scoped, tag = 'internal scratch']
  #allocation2 [shape = 'f32[16,384]{1,0:T(8,128)}', space=vmem, size = 0x6000, scoped, tag = 'scratch operand']
  %s0 = inlined_call_operand.vmem [shape: bf16[16,128], index: 0, kind: input, shape index: {}]
  %s1 = inlined_call_operand.vmem [shape: f32[2,2,128], index: 1, kind: input, shape index: {}]
  %s2 = inlined_call_operand.vmem [shape: bf16[2,128,384], index: 2, kind: input, shape index: {}]
  %s3 = inlined_call_operand.vmem [shape: bf16[2,128,384], index: 3, kind: input, shape index: {}]
  %s4 = inlined_call_operand.vmem [shape: f32[2,1,384], index: 4, kind: input, shape index: {}]
  %s5 = inlined_call_operand.vmem [shape: f32[2,1,384], index: 5, kind: input, shape index: {}]
  %s6 = inlined_call_operand.vmem [shape: f32[16,128], index: 6, kind: output, shape index: {0}]
  %s7 = inlined_call_operand.hbm [shape: f32[2,2,128], index: 7, kind: output, shape index: {1}]
  %8 = xla_tuple %s6, %s7
  %s9 = sld [smem:[#allocation0]]
  $region73: #{decoder_s2s_forward.1} parent=0
    _
  %s11 = ssub.s32 1, %s9
  %s12 = scalar_select 0, %s11, %s9
  $region1: #{decoder_s2s_forward.1} parent=0
    #allocation3 [shape = 'u8[2048]{0}', space=vmem, size = 0x800, scoped, tag = 'output window, operand 1']
    #allocation4 [shape = 's32[2]{0}', space=sflag, size = 0x8, scoped, tag = 'scoped memory for decoder_s2s_forward.1']
    %13 = vsyncpa [#allocation4], 0
    %s14 = scalar_lea.sflag [#allocation4], 1
    %15 = vsyncpa %s14, 0
    loop: start=0, step=1, limit=4
    $region2: #{decoder_s2s_forward.1} parent=1 // loop_pre_header
      _
    $region3: #{decoder_s2s_forward.1} parent=1 // loop_header
      %s17 = sphi 0, %s21
      %p18 = scmp.ge.s32.totalorder %s17, 4
      %s25 = sphi 0, %s25
      %s27 = sphi 0, %s25
      %s28 = sphi 0, %s27
      %s42 = sphi 0, %s28
      %s48 = sphi 0, %s50
      %s51 = sphi 0, %s48
      %s52 = sphi 0, %s51
      %s68 = sphi 0, %s52
      %s74 = sphi 0, %s76
      %s77 = sphi 0, %s74
      %s78 = sphi 0, %s77
      %s94 = sphi 0, %s78
      %s100 = sphi 0, %s102
      %s103 = sphi 0, %s100
      %s104 = sphi 0, %s103
      %s120 = sphi 0, %s104
      %s126 = sphi 0, %s128
      %s129 = sphi 0, %s126
      %s130 = sphi 0, %s129
      %s146 = sphi 0, %s130
      %s152 = sphi 0, %s154
      %s155 = sphi 0, %s152
      %s156 = sphi 0, %s155
      %s172 = sphi 0, %s156
      %s176 = sphi 0, %s176
      %s178 = sphi 0, %s176
      %s179 = sphi 0, %s178
      %s193 = sphi 0, %s179
      %s199 = sphi 0, %s201
      %s202 = sphi 0, %s199
      %s203 = sphi 0, %s202
      %s219 = sphi 0, %s203
    $region4: #{decoder_s2s_forward.1} parent=1 // loop_header_branch
      %20 = sbr.rel (%p18) target = $region8
    $region5: #{decoder_s2s_forward.1} parent=1 // loop_body
      %s22 = ssub.s32 %s17, 1
      %s23 = ssub.s32 %s17, 2
      %s24 = sadd.s32 %s17, 1
      %s26 = sadd.s32 %s25, 1
      %p29 = scmp.eq.s32.totalorder %s17, 1
      %p30 = scmp.ne.s32.totalorder %s25, %s27
      %p31 = scmp.eq.s32.totalorder %s17, 0
      %p32 = por %p30, %p31
      %p33 = scmp.ne.s32.totalorder %s25, %s27
      %p34 = scmp.eq.s32.totalorder %s22, 1
      %p35 = por %p33, %p34
      %p36 = scmp.ne.s32.totalorder %s27, %s28
      %p37 = scmp.eq.s32.totalorder %s22, 0
      %p38 = por %p36, %p37
      %p39 = scmp.ne.s32.totalorder %s27, %s28
      %p40 = scmp.eq.s32.totalorder %s23, 1
      %p41 = por %p39, %p40
      %p43 = scmp.ne.s32.totalorder %s28, %s42
      %p44 = scmp.eq.s32.totalorder %s23, 0
      %p45 = por %p43, %p44
      %s46 = ssub.s32 %s17, %s24
      %p47 = scmp.eq.s32.totalorder %s46, 0
      %s49 = sadd.s32 %s48, 1
      %s50 = scalar_select %p47, %s48, %s49
      %p53 = pneg %p47
      %p54 = scmp.eq.s32.totalorder %s17, 1
      %p55 = por %p53, %p54
      %p56 = scmp.ne.s32.totalorder %s48, %s51
      %p57 = scmp.eq.s32.totalorder %s17, 0
      %p58 = por %p56, %p57
      %p59 = scmp.ne.s32.totalorder %s48, %s51
      %p60 = scmp.eq.s32.totalorder %s22, 1
      %p61 = por %p59, %p60
      %p62 = scmp.ne.s32.totalorder %s51, %s52
      %p63 = scmp.eq.s32.totalorder %s22, 0
      %p64 = por %p62, %p63
      %p65 = scmp.ne.s32.totalorder %s51, %s52
      %p66 = scmp.eq.s32.totalorder %s23, 1
      %p67 = por %p65, %p66
      %p69 = scmp.ne.s32.totalorder %s52, %s68
      %p70 = scmp.eq.s32.totalorder %s23, 0
      %p71 = por %p69, %p70
      %s72 = ssub.s32 %s17, %s24
      %p73 = scmp.eq.s32.totalorder %s72, 0
      %s75 = sadd.s32 %s74, 1
      %s76 = scalar_select %p73, %s74, %s75
      %p79 = pneg %p73
      %p80 = scmp.eq.s32.totalorder %s17, 1
      %p81 = por %p79, %p80
      %p82 = scmp.ne.s32.totalorder %s74, %s77
      %p83 = scmp.eq.s32.totalorder %s17, 0
      %p84 = por %p82, %p83
      %p85 = scmp.ne.s32.totalorder %s74, %s77
      %p86 = scmp.eq.s32.totalorder %s22, 1
      %p87 = por %p85, %p86
      %p88 = scmp.ne.s32.totalorder %s77, %s78
      %p89 = scmp.eq.s32.totalorder %s22, 0
      %p90 = por %p88, %p89
      %p91 = scmp.ne.s32.totalorder %s77, %s78
      %p92 = scmp.eq.s32.totalorder %s23, 1
      %p93 = por %p91, %p92
      %p95 = scmp.ne.s32.totalorder %s78, %s94
      %p96 = scmp.eq.s32.totalorder %s23, 0
      %p97 = por %p95, %p96
      %s98 = ssub.s32 %s17, %s24
      %p99 = scmp.eq.s32.totalorder %s98, 0
      %s101 = sadd.s32 %s100, 1
      %s102 = scalar_select %p99, %s100, %s101
      %p105 = pneg %p99
      %p106 = scmp.eq.s32.totalorder %s17, 1
      %p107 = por %p105, %p106
      %p108 = scmp.ne.s32.totalorder %s100, %s103
      %p109 = scmp.eq.s32.totalorder %s17, 0
      %p110 = por %p108, %p109
      %p111 = scmp.ne.s32.totalorder %s100, %s103
      %p112 = scmp.eq.s32.totalorder %s22, 1
      %p113 = por %p111, %p112
      %p114 = scmp.ne.s32.totalorder %s103, %s104
      %p115 = scmp.eq.s32.totalorder %s22, 0
      %p116 = por %p114, %p115
      %p117 = scmp.ne.s32.totalorder %s103, %s104
      %p118 = scmp.eq.s32.totalorder %s23, 1
      %p119 = por %p117, %p118
      %p121 = scmp.ne.s32.totalorder %s104, %s120
      %p122 = scmp.eq.s32.totalorder %s23, 0
      %p123 = por %p121, %p122
      %s124 = ssub.s32 %s17, %s24
      %p125 = scmp.eq.s32.totalorder %s124, 0
      %s127 = sadd.s32 %s126, 1
      %s128 = scalar_select %p125, %s126, %s127
      %p131 = pneg %p125
      %p132 = scmp.eq.s32.totalorder %s17, 1
      %p133 = por %p131, %p132
      %p134 = scmp.ne.s32.totalorder %s126, %s129
      %p135 = scmp.eq.s32.totalorder %s17, 0
      %p136 = por %p134, %p135
      %p137 = scmp.ne.s32.totalorder %s126, %s129
      %p138 = scmp.eq.s32.totalorder %s22, 1
      %p139 = por %p137, %p138
      %p140 = scmp.ne.s32.totalorder %s129, %s130
      %p141 = scmp.eq.s32.totalorder %s22, 0
      %p142 = por %p140, %p141
      %p143 = scmp.ne.s32.totalorder %s129, %s130
      %p144 = scmp.eq.s32.totalorder %s23, 1
      %p145 = por %p143, %p144
      %p147 = scmp.ne.s32.totalorder %s130, %s146
      %p148 = scmp.eq.s32.totalorder %s23, 0
      %p149 = por %p147, %p148
      %s150 = ssub.s32 %s17, %s24
      %p151 = scmp.eq.s32.totalorder %s150, 0
      %s153 = sadd.s32 %s152, 1
      %s154 = scalar_select %p151, %s152, %s153
      %p157 = pneg %p151
      %p158 = scmp.eq.s32.totalorder %s17, 1
      %p159 = por %p157, %p158
      %p160 = scmp.ne.s32.totalorder %s152, %s155
      %p161 = scmp.eq.s32.totalorder %s17, 0
      %p162 = por %p160, %p161
      %p163 = scmp.ne.s32.totalorder %s152, %s155
      %p164 = scmp.eq.s32.totalorder %s22, 1
      %p165 = por %p163, %p164
      %p166 = scmp.ne.s32.totalorder %s155, %s156
      %p167 = scmp.eq.s32.totalorder %s22, 0
      %p168 = por %p166, %p167
      %p169 = scmp.ne.s32.totalorder %s155, %s156
      %p170 = scmp.eq.s32.totalorder %s23, 1
      %p171 = por %p169, %p170
      %p173 = scmp.ne.s32.totalorder %s156, %s172
      %p174 = scmp.eq.s32.totalorder %s23, 0
      %p175 = por %p173, %p174
      %s177 = sadd.s32 %s176, 1
      %p180 = scmp.eq.s32.totalorder %s17, 1
      %p181 = scmp.ne.s32.totalorder %s176, %s178
      %p182 = scmp.eq.s32.totalorder %s17, 0
      %p183 = por %p181, %p182
      %p184 = scmp.ne.s32.totalorder %s176, %s178
      %p185 = scmp.eq.s32.totalorder %s22, 1
      %p186 = por %p184, %p185
      %p187 = scmp.ne.s32.totalorder %s178, %s179
      %p188 = scmp.eq.s32.totalorder %s22, 0
      %p189 = por %p187, %p188
      %p190 = scmp.ne.s32.totalorder %s178, %s179
      %p191 = scmp.eq.s32.totalorder %s23, 1
      %p192 = por %p190, %p191
      %p194 = scmp.ne.s32.totalorder %s179, %s193
      %p195 = scmp.eq.s32.totalorder %s23, 0
      %p196 = por %p194, %p195
      %s197 = ssub.s32 %s17, %s24
      %p198 = scmp.eq.s32.totalorder %s197, 0
      %s200 = sadd.s32 %s199, 1
      %s201 = scalar_select %p198, %s199, %s200
      %p204 = pneg %p198
      %p205 = scmp.eq.s32.totalorder %s17, 1
      %p206 = por %p204, %p205
      %p207 = scmp.ne.s32.totalorder %s199, %s202
      %p208 = scmp.eq.s32.totalorder %s17, 0
      %p209 = por %p207, %p208
      %p210 = scmp.ne.s32.totalorder %s199, %s202
      %p211 = scmp.eq.s32.totalorder %s22, 1
      %p212 = por %p210, %p211
      %p213 = scmp.ne.s32.totalorder %s202, %s203
      %p214 = scmp.eq.s32.totalorder %s22, 0
      %p215 = por %p213, %p214
      %p216 = scmp.ne.s32.totalorder %s202, %s203
      %p217 = scmp.eq.s32.totalorder %s23, 1
      %p218 = por %p216, %p217
      %p220 = scmp.ne.s32.totalorder %s203, %s219
      %p221 = scmp.eq.s32.totalorder %s23, 0
      %p222 = por %p220, %p221
      %p223 = scmp.le.s32.totalorder 1, %s17
      %p224 = scmp.lt.s32.totalorder %s17, 3
      %p225 = pnand %p223, %p224
      %p226 = pneg %p225
      // Predicated region
      $region9: #{decoder_s2s_forward.1} parent=5 // pred_check
        _
      $region10: #{decoder_s2s_forward.1} parent=5 // pred_check_branch
        %228 = sbr.rel (%p225) target = $region12
      $region11: #{decoder_s2s_forward.1} parent=5 // pred_region
        %s229 = ssub.s32 %s17, 1
        // Predicated region
        $region13: #{decoder_s2s_forward.1} parent=11 // pred_check
          %p230 = pneg %p38
        $region14: #{decoder_s2s_forward.1} parent=11 // pred_check_branch
          %232 = sbr.rel (%p230) target = $region16
        $region15: #{decoder_s2s_forward.1} parent=11 // pred_region
          _
        $region16: #{decoder_s2s_forward.1} parent=11 // pred_fallthru
          _
      $region12: #{decoder_s2s_forward.1} parent=5 // pred_fallthru
        _
      %p233 = scmp.lt.s32.totalorder %s17, 2
      // Predicated region
      $region17: #{decoder_s2s_forward.1} parent=5 // pred_check
        %p234 = pneg %p233
      $region18: #{decoder_s2s_forward.1} parent=5 // pred_check_branch
        %236 = sbr.rel (%p234) target = $region20
      $region19: #{decoder_s2s_forward.1} parent=5 // pred_region
        // Predicated region
        $region21: #{decoder_s2s_forward.1} parent=19 // pred_check
          %p237 = pneg %p58
        $region22: #{decoder_s2s_forward.1} parent=19 // pred_check_branch
          %239 = sbr.rel (%p237) target = $region24
        $region23: #{decoder_s2s_forward.1} parent=19 // pred_region
          %p240 = scmp.lt.s32.totalorder %s17, 1
          %s241 = scalar_select %p240, %s17, 1
          %s242 = smul.addr %s241, 2
          %s243 = scalar_lea.vmem %s1, %s242
        $region24: #{decoder_s2s_forward.1} parent=19 // pred_fallthru
          _
        // Predicated region
        $region25: #{decoder_s2s_forward.1} parent=19 // pred_check
          %p244 = pneg %p84
        $region26: #{decoder_s2s_forward.1} parent=19 // pred_check_branch
          %246 = sbr.rel (%p244) target = $region28
        $region27: #{decoder_s2s_forward.1} parent=19 // pred_region
          %p247 = scmp.lt.s32.totalorder %s17, 1
          %s248 = scalar_select %p247, %s17, 1
          %s249 = smul.addr %s248, 48
          %s250 = smul.addr %s249, 4
          %s251 = scalar_lea.vmem %s2, %s250
        $region28: #{decoder_s2s_forward.1} parent=19 // pred_fallthru
          _
        // Predicated region
        $region29: #{decoder_s2s_forward.1} parent=19 // pred_check
          %p252 = pneg %p110
        $region30: #{decoder_s2s_forward.1} parent=19 // pred_check_branch
          %254 = sbr.rel (%p252) target = $region32
        $region31: #{decoder_s2s_forward.1} parent=19 // pred_region
          %p255 = scmp.lt.s32.totalorder %s17, 1
          %s256 = scalar_select %p255, %s17, 1
          %s257 = smul.addr %s256, 48
          %s258 = smul.addr %s257, 4
          %s259 = scalar_lea.vmem %s3, %s258
        $region32: #{decoder_s2s_forward.1} parent=19 // pred_fallthru
          _
        // Predicated region
        $region33: #{decoder_s2s_forward.1} parent=19 // pred_check
          %p260 = pneg %p136
        $region34: #{decoder_s2s_forward.1} parent=19 // pred_check_branch
          %262 = sbr.rel (%p260) target = $region36
        $region35: #{decoder_s2s_forward.1} parent=19 // pred_region
          %p263 = scmp.lt.s32.totalorder %s17, 1
          %s264 = scalar_select %p263, %s17, 1
          %s265 = smul.addr %s264, 3
          %s266 = scalar_lea.vmem %s4, %s265
        $region36: #{decoder_s2s_forward.1} parent=19 // pred_fallthru
          _
        // Predicated region
        $region37: #{decoder_s2s_forward.1} parent=19 // pred_check
          %p267 = pneg %p162
        $region38: #{decoder_s2s_forward.1} parent=19 // pred_check_branch
          %269 = sbr.rel (%p267) target = $region40
        $region39: #{decoder_s2s_forward.1} parent=19 // pred_region
          %p270 = scmp.lt.s32.totalorder %s17, 1
          %s271 = scalar_select %p270, %s17, 1
          %s272 = smul.addr %s271, 3
          %s273 = scalar_lea.vmem %s5, %s272
        $region40: #{decoder_s2s_forward.1} parent=19 // pred_fallthru
          _
      $region20: #{decoder_s2s_forward.1} parent=5 // pred_fallthru
        _
      %p274 = scmp.le.s32.totalorder 1, %s17
      %p275 = scmp.lt.s32.totalorder %s17, 3
      %p276 = pnand %p274, %p275
      %p277 = pneg %p276
      // Predicated region
      $region41: #{decoder_s2s_forward.1} parent=5 // pred_check
        _
      $region42: #{decoder_s2s_forward.1} parent=5 // pred_check_branch
        %279 = sbr.rel (%p276) target = $region44
      $region43: #{decoder_s2s_forward.1} parent=5 // pred_region
        %s280 = ssub.s32 %s17, 1
        %p281 = pneg %p38
        %p282 = pneg %p35
        %p283 = scmp.lt.s32.totalorder %s22, 1
        %s284 = scalar_select %p283, %s22, 1
        %s285 = smul.addr %s284, 2
        %s286 = scalar_lea.vmem %s1, %s285
        %p287 = pneg %p64
        %p288 = pneg %p61
        %p289 = scmp.lt.s32.totalorder %s22, 1
        %s290 = scalar_select %p289, %s22, 1
        %s291 = smul.addr %s290, 48
        %s292 = smul.addr %s291, 4
        %s293 = scalar_lea.vmem %s2, %s292
        %p294 = pneg %p90
        %p295 = pneg %p87
        %p296 = scmp.lt.s32.totalorder %s22, 1
        %s297 = scalar_select %p296, %s22, 1
        %s298 = smul.addr %s297, 48
        %s299 = smul.addr %s298, 4
        %s300 = scalar_lea.vmem %s3, %s299
        %p301 = pneg %p116
        %p302 = pneg %p113
        %p303 = scmp.lt.s32.totalorder %s22, 1
        %s304 = scalar_select %p303, %s22, 1
        %s305 = smul.addr %s304, 3
        %s306 = scalar_lea.vmem %s4, %s305
        %p307 = pneg %p142
        %p308 = pneg %p139
        %p309 = scmp.lt.s32.totalorder %s22, 1
        %s310 = scalar_select %p309, %s22, 1
        %s311 = smul.addr %s310, 3
        %s312 = scalar_lea.vmem %s5, %s311
        %p313 = pneg %p168
        %p314 = pneg %p165
        %p315 = pneg %p189
        %p316 = pneg %p186
        %p317 = pneg %p215
        %p318 = pneg %p212
        %s319 = sand.u32 %s202, 1
        %s320 = scalar_lea.sflag [#allocation4], %s319
        %s321 = sand.u32 %s202, 1
        %s322 = smul.addr %s321, 2
        %s323 = scalar_lea.vmem [#allocation3], %s322
        %p324 = scmp.lt.s32.totalorder %s22, 1
        %s325 = scalar_select %p324, %s22, 1
        %s326 = smul.addr %s325, 2
        %s327 = scalar_lea.vmem %s1, %s326
        %p328 = scmp.lt.s32.totalorder %s22, 1
        %s329 = scalar_select %p328, %s22, 1
        %s330 = smul.addr %s329, 48
        %s331 = smul.addr %s330, 4
        %s332 = scalar_lea.vmem %s2, %s331
        %p333 = scmp.lt.s32.totalorder %s22, 1
        %s334 = scalar_select %p333, %s22, 1
        %s335 = smul.addr %s334, 48
        %s336 = smul.addr %s335, 4
        %s337 = scalar_lea.vmem %s3, %s336
        %p338 = scmp.lt.s32.totalorder %s22, 1
        %s339 = scalar_select %p338, %s22, 1
        %s340 = smul.addr %s339, 3
        %s341 = scalar_lea.vmem %s4, %s340
        %p342 = scmp.lt.s32.totalorder %s22, 1
        %s343 = scalar_select %p342, %s22, 1
        %s344 = smul.addr %s343, 3
        %s345 = scalar_lea.vmem %s5, %s344
        %v347 = vld [vmem:[%s332] sm:$0xff]
        %v348 = vld [vmem:[%s332 + $0x8] sm:$0xf]
        %v349 = vld [vmem:[%s332 + $0xc] sm:$0xff]
        %v350 = vld [vmem:[%s332 + $0x14] sm:$0xf]
        %v351 = vld [vmem:[%s332 + $0x18] sm:$0xff]
        %v352 = vld [vmem:[%s332 + $0x20] sm:$0xf]
        %v353 = vld [vmem:[%s332 + $0x24] sm:$0xff]
        %v354 = vld [vmem:[%s332 + $0x2c] sm:$0xf]
        %v355 = vld [vmem:[%s332 + $0x30] sm:$0xff]
        %v356 = vld [vmem:[%s332 + $0x38] sm:$0xf]
        %v357 = vld [vmem:[%s332 + $0x3c] sm:$0xff]
        %v358 = vld [vmem:[%s332 + $0x44] sm:$0xf]
        %v359 = vld [vmem:[%s332 + $0x48] sm:$0xff]
        %v360 = vld [vmem:[%s332 + $0x50] sm:$0xf]
        %v361 = vld [vmem:[%s332 + $0x54] sm:$0xff]
        %v362 = vld [vmem:[%s332 + $0x5c] sm:$0xf]
        %v363 = vld [vmem:[%s332 + $0x60] sm:$0xff]
        %v364 = vld [vmem:[%s332 + $0x68] sm:$0xf]
        %v365 = vld [vmem:[%s332 + $0x6c] sm:$0xff]
        %v366 = vld [vmem:[%s332 + $0x74] sm:$0xf]
        %v367 = vld [vmem:[%s332 + $0x78] sm:$0xff]
        %v368 = vld [vmem:[%s332 + $0x80] sm:$0xf]
        %v369 = vld [vmem:[%s332 + $0x84] sm:$0xff]
        %v370 = vld [vmem:[%s332 + $0x8c] sm:$0xf]
        %v371 = vld [vmem:[%s332 + $0x90] sm:$0xff]
        %v372 = vld [vmem:[%s332 + $0x98] sm:$0xf]
        %v373 = vld [vmem:[%s332 + $0x9c] sm:$0xff]
        %v374 = vld [vmem:[%s332 + $0xa4] sm:$0xf]
        %v375 = vld [vmem:[%s332 + $0xa8] sm:$0xff]
        %v376 = vld [vmem:[%s332 + $0xb0] sm:$0xf]
        %v377 = vld [vmem:[%s332 + $0xb4] sm:$0xff]
        %v378 = vld [vmem:[%s332 + $0xbc] sm:$0xf]
        %v379 = vld [vmem:[%s337] sm:$0xff]
        %v380 = vld [vmem:[%s337 + $0x8] sm:$0xf]
        %v381 = vld [vmem:[%s337 + $0xc] sm:$0xff]
        %v382 = vld [vmem:[%s337 + $0x14] sm:$0xf]
        %v383 = vld [vmem:[%s337 + $0x18] sm:$0xff]
        %v384 = vld [vmem:[%s337 + $0x20] sm:$0xf]
        %v385 = vld [vmem:[%s337 + $0x24] sm:$0xff]
        %v386 = vld [vmem:[%s337 + $0x2c] sm:$0xf]
        %v387 = vld [vmem:[%s337 + $0x30] sm:$0xff]
        %v388 = vld [vmem:[%s337 + $0x38] sm:$0xf]
        %v389 = vld [vmem:[%s337 + $0x3c] sm:$0xff]
        %v390 = vld [vmem:[%s337 + $0x44] sm:$0xf]
        %v391 = vld [vmem:[%s337 + $0x48] sm:$0xff]
        %v392 = vld [vmem:[%s337 + $0x50] sm:$0xf]
        %v393 = vld [vmem:[%s337 + $0x54] sm:$0xff]
        %v394 = vld [vmem:[%s337 + $0x5c] sm:$0xf]
        %v395 = vld [vmem:[%s337 + $0x60] sm:$0xff]
        %v396 = vld [vmem:[%s337 + $0x68] sm:$0xf]
        %v397 = vld [vmem:[%s337 + $0x6c] sm:$0xff]
        %v398 = vld [vmem:[%s337 + $0x74] sm:$0xf]
        %v399 = vld [vmem:[%s337 + $0x78] sm:$0xff]
        %v400 = vld [vmem:[%s337 + $0x80] sm:$0xf]
        %v401 = vld [vmem:[%s337 + $0x84] sm:$0xff]
        %v402 = vld [vmem:[%s337 + $0x8c] sm:$0xf]
        %v403 = vld [vmem:[%s337 + $0x90] sm:$0xff]
        %v404 = vld [vmem:[%s337 + $0x98] sm:$0xf]
        %v405 = vld [vmem:[%s337 + $0x9c] sm:$0xff]
        %v406 = vld [vmem:[%s337 + $0xa4] sm:$0xf]
        %v407 = vld [vmem:[%s337 + $0xa8] sm:$0xff]
        %v408 = vld [vmem:[%s337 + $0xb0] sm:$0xf]
        %v409 = vld [vmem:[%s337 + $0xb4] sm:$0xff]
        %v410 = vld [vmem:[%s337 + $0xbc] sm:$0xf]
        %v411 = vld [vmem:[%s341] sm:$0x7]
        %v412 = vld [vmem:[%s345] sm:$0x7]
        %v414 = vlaneseq
        %v415 = vshrl.u32 %v414, 7
        %v416 = vsub.s32 0, %v415
        %v417 = vrot.slane %v412, %v416
        %v418 = vlaneseq
        %v419 = vshrl.u32 %v418, 7
        %v420 = vsub.s32 1, %v419
        %v421 = vrot.slane %v412, %v420
        %v422 = vlaneseq
        %v423 = vshrl.u32 %v422, 7
        %v424 = vsub.s32 2, %v423
        %v425 = vrot.slane %v412, %v424
        %p429 = scmp.eq.s32.totalorder %s22, 0
        // Predicated region
        $region45: #{decoder_s2s_forward.1} parent=43 // pred_check
          %p430 = pneg %p429
        $region46: #{decoder_s2s_forward.1} parent=43 // pred_check_branch
          %432 = sbr.rel (%p430) target = $region48
        $region47: #{decoder_s2s_forward.1} parent=43 // pred_region
          %v433 = vld [vmem:[%s0] sm:$0xf]
          %v434 = vld [vmem:[%s0 + $0x4] sm:$0xf]
          %v436 = vlaneseq
          %v437 = vshrl.u32 %v436, 7
          %v438 = vsub.s32 0, %v437
          %v439 = vrot.slane %v411, %v438
          %v440 = vlaneseq
          %v441 = vshrl.u32 %v440, 7
          %v442 = vsub.s32 1, %v441
          %v443 = vrot.slane %v411, %v442
          %v444 = vlaneseq
          %v445 = vshrl.u32 %v444, 7
          %v446 = vsub.s32 2, %v445
          %v447 = vrot.slane %v411, %v446
          %v453 = vunpack.c.l.b16 %v433
          %v454 = vunpack.c.l.b16 %v434
          %v455 = vpack.c.b16 %v454, %v453
          %v489 = vunpack.c.l.b16 %v347
          %v490 = vunpack.c.h.b16 %v347
          %v491 = vunpack.c.l.b16 %v348
          %v492 = vunpack.c.l.b16 %v349
          %v493 = vunpack.c.h.b16 %v349
          %v494 = vunpack.c.l.b16 %v350
          %v495 = vunpack.c.l.b16 %v351
          %v496 = vunpack.c.h.b16 %v351
          %v497 = vunpack.c.l.b16 %v352
          %v498 = vunpack.c.l.b16 %v353
          %v499 = vunpack.c.h.b16 %v353
          %v500 = vunpack.c.l.b16 %v354
          %v501 = vunpack.c.l.b16 %v355
          %v502 = vunpack.c.h.b16 %v355
          %v503 = vunpack.c.l.b16 %v356
          %v504 = vunpack.c.l.b16 %v357
          %v505 = vunpack.c.h.b16 %v357
          %v506 = vunpack.c.l.b16 %v358
          %v507 = vunpack.c.l.b16 %v359
          %v508 = vunpack.c.h.b16 %v359
          %v509 = vunpack.c.l.b16 %v360
          %v510 = vunpack.c.l.b16 %v361
          %v511 = vunpack.c.h.b16 %v361
          %v512 = vunpack.c.l.b16 %v362
          %v513 = vunpack.c.l.b16 %v363
          %v514 = vunpack.c.h.b16 %v363
          %v515 = vunpack.c.l.b16 %v364
          %v516 = vunpack.c.l.b16 %v365
          %v517 = vunpack.c.h.b16 %v365
          %v518 = vunpack.c.l.b16 %v366
          %v519 = vunpack.c.l.b16 %v367
          %v520 = vunpack.c.h.b16 %v367
          %v521 = vunpack.c.l.b16 %v368
          %v522 = vunpack.c.l.b16 %v369
          %v523 = vunpack.c.h.b16 %v369
          %v524 = vunpack.c.l.b16 %v370
          %v525 = vunpack.c.l.b16 %v371
          %v526 = vunpack.c.h.b16 %v371
          %v527 = vunpack.c.l.b16 %v372
          %v528 = vunpack.c.l.b16 %v373
          %v529 = vunpack.c.h.b16 %v373
          %v530 = vunpack.c.l.b16 %v374
          %v531 = vunpack.c.l.b16 %v375
          %v532 = vunpack.c.h.b16 %v375
          %v533 = vunpack.c.l.b16 %v376
          %v534 = vunpack.c.l.b16 %v377
          %v535 = vunpack.c.h.b16 %v377
          %v536 = vunpack.c.l.b16 %v378
          %v537 = vpack.c.b16 %v492, %v489
          %v538 = vpack.c.b16 %v493, %v490
          %v539 = vpack.c.b16 %v494, %v491
          %v540 = vpack.c.b16 %v498, %v495
          %v541 = vpack.c.b16 %v499, %v496
          %v542 = vpack.c.b16 %v500, %v497
          %v543 = vpack.c.b16 %v504, %v501
          %v544 = vpack.c.b16 %v505, %v502
          %v545 = vpack.c.b16 %v506, %v503
          %v546 = vpack.c.b16 %v510, %v507
          %v547 = vpack.c.b16 %v511, %v508
          %v548 = vpack.c.b16 %v512, %v509
          %v549 = vpack.c.b16 %v516, %v513
          %v550 = vpack.c.b16 %v517, %v514
          %v551 = vpack.c.b16 %v518, %v515
          %v552 = vpack.c.b16 %v522, %v519
          %v553 = vpack.c.b16 %v523, %v520
          %v554 = vpack.c.b16 %v524, %v521
          %v555 = vpack.c.b16 %v528, %v525
          %v556 = vpack.c.b16 %v529, %v526
          %v557 = vpack.c.b16 %v530, %v527
          %v558 = vpack.c.b16 %v534, %v531
          %v559 = vpack.c.b16 %v535, %v532
          %v560 = vpack.c.b16 %v536, %v533
          %585 = vmatprep.subr.bf16.mxu0 %v538
          %586 = vmatpush1.bf16.msra.mxu0 %v537
          %587 = vmatprep.subr.bf16.mxu0 %v541
          %588 = vmatpush1.bf16.msra.mxu0 %v540
          %589 = vmatprep.subr.bf16.mxu0 %v544
          %590 = vmatpush1.bf16.msra.mxu0 %v543
          %591 = vmatprep.subr.bf16.mxu0 %v547
          %592 = vmatpush1.bf16.msra.mxu0 %v546
          %593 = vmatprep.subr.bf16.mxu0 %v550
          %594 = vmatpush1.bf16.msra.mxu0 %v549
          %595 = vmatprep.subr.bf16.mxu0 %v553
          %596 = vmatpush1.bf16.msra.mxu0 %v552
          %597 = vmatprep.subr.bf16.mxu0 %v556
          %598 = vmatpush1.bf16.msra.mxu0 %v555
          %599 = vmatprep.subr.bf16.mxu0 %v559
          %600 = vmatpush1.bf16.msra.mxu0 %v558
          %601 = vmatprep.subr.bf16.mxu0 0
          %602 = vmatpush1.bf16.msra.mxu0 0
          %603 = vmatprep.subr.bf16.mxu0 0
          %604 = vmatpush1.bf16.msra.mxu0 0
          %605 = vmatprep.subr.bf16.mxu0 0
          %606 = vmatpush1.bf16.msra.mxu0 0
          %607 = vmatprep.subr.bf16.mxu0 0
          %608 = vmatpush1.bf16.msra.mxu0 0
          %609 = vmatprep.subr.bf16.mxu0 0
          %610 = vmatpush1.bf16.msra.mxu0 0
          %611 = vmatprep.subr.bf16.mxu0 0
          %612 = vmatpush1.bf16.msra.mxu0 0
          %613 = vmatprep.subr.bf16.mxu0 0
          %614 = vmatpush1.bf16.msra.mxu0 0
          %615 = vmatprep.subr.bf16.mxu0 0
          %616 = vmatpush1.bf16.msra.mxu0 0
          %617 = vmatprep.mubr.bf16.mxu0 0
          %618 = vmatmul.mubr.bf16.gmra.mrb[0].mxu0 %v455
          %v619 = vpop.f32.mrb[0].mxu0
          %v620 = vadd.f32 %v439, %v619
          %v621 = vpop.f32.mrb[0].mxu0
          %v622 = vadd.f32 %v443, %v621
          %v623 = vpop.f32.mrb[0].mxu0
          %v624 = vadd.f32 %v439, %v623
          %v625 = vpop.f32.mrb[0].mxu0
          %v626 = vadd.f32 %v443, %v625
          %627 = vdwg.mxu0
          %628 = vmatprep.subr.bf16.mxu0 0
          %629 = vmatpush1.bf16.msra.mxu0 %v539
          %630 = vmatprep.subr.bf16.mxu0 0
          %631 = vmatpush1.bf16.msra.mxu0 %v542
          %632 = vmatprep.subr.bf16.mxu0 0
          %633 = vmatpush1.bf16.msra.mxu0 %v545
          %634 = vmatprep.subr.bf16.mxu0 0
          %635 = vmatpush1.bf16.msra.mxu0 %v548
          %636 = vmatprep.subr.bf16.mxu0 0
          %637 = vmatpush1.bf16.msra.mxu0 %v551
          %638 = vmatprep.subr.bf16.mxu0 0
          %639 = vmatpush1.bf16.msra.mxu0 %v554
          %640 = vmatprep.subr.bf16.mxu0 0
          %641 = vmatpush1.bf16.msra.mxu0 %v557
          %642 = vmatprep.subr.bf16.mxu0 0
          %643 = vmatpush1.bf16.msra.mxu0 %v560
          %644 = vmatprep.subr.bf16.mxu0 0
          %645 = vmatpush1.bf16.msra.mxu0 0
          %646 = vmatprep.subr.bf16.mxu0 0
          %647 = vmatpush1.bf16.msra.mxu0 0
          %648 = vmatprep.subr.bf16.mxu0 0
          %649 = vmatpush1.bf16.msra.mxu0 0
          %650 = vmatprep.subr.bf16.mxu0 0
          %651 = vmatpush1.bf16.msra.mxu0 0
          %652 = vmatprep.subr.bf16.mxu0 0
          %653 = vmatpush1.bf16.msra.mxu0 0
          %654 = vmatprep.subr.bf16.mxu0 0
          %655 = vmatpush1.bf16.msra.mxu0 0
          %656 = vmatprep.subr.bf16.mxu0 0
          %657 = vmatpush1.bf16.msra.mxu0 0
          %658 = vmatprep.subr.bf16.mxu0 0
          %659 = vmatpush1.bf16.msra.mxu0 0
          %660 = vmatprep.mubr.bf16.mxu0 0
          %661 = vmatmul.mubr.bf16.gmra.mrb[0].mxu0 %v455
          %v662 = vpop.f32.mrb[0].mxu0
          %v663 = vadd.f32 %v447, %v662
          %v664 = vpop.f32.mrb[0].mxu0
          %v665 = vpop.f32.mrb[0].mxu0
          %v666 = vadd.f32 %v447, %v665
          %v667 = vpop.f32.mrb[0].mxu0
          %668 = vdwg.mxu0
          %669 = vst [vmem:[#allocation2] sm:$0xff] %v620
          %670 = vst [vmem:[#allocation2 + $0x8] sm:$0xff] %v622
          %671 = vst [vmem:[#allocation2 + $0x10] sm:$0xff] %v663
          %672 = vst [vmem:[#allocation2 + $0x18] sm:$0xff] %v624
          %673 = vst [vmem:[#allocation2 + $0x20] sm:$0xff] %v626
          %674 = vst [vmem:[#allocation2 + $0x28] sm:$0xff] %v666
        $region48: #{decoder_s2s_forward.1} parent=43 // pred_fallthru
          _
        %p675 = scmp.gt.s32.totalorder %s22, 0
        // Predicated region
        $region49: #{decoder_s2s_forward.1} parent=43 // pred_check
          %p676 = pneg %p675
        $region50: #{decoder_s2s_forward.1} parent=43 // pred_check_branch
          %678 = sbr.rel (%p676) target = $region52
        $region51: #{decoder_s2s_forward.1} parent=43 // pred_region
          %v679 = vld [vmem:[%s6] sm:$0xff]
          %v680 = vld [vmem:[%s6 + $0x8] sm:$0xff]
          %v681 = vpack.c.bf16 %v680, %v679
          %v683 = vlaneseq
          %v684 = vshrl.u32 %v683, 7
          %v685 = vsub.s32 0, %v684
          %v686 = vrot.slane %v411, %v685
          %v687 = vlaneseq
          %v688 = vshrl.u32 %v687, 7
          %v689 = vsub.s32 1, %v688
          %v690 = vrot.slane %v411, %v689
          %v691 = vlaneseq
          %v692 = vshrl.u32 %v691, 7
          %v693 = vsub.s32 2, %v692
          %v694 = vrot.slane %v411, %v693
          %v730 = vunpack.c.l.b16 %v347
          %v731 = vunpack.c.h.b16 %v347
          %v732 = vunpack.c.l.b16 %v348
          %v733 = vunpack.c.l.b16 %v349
          %v734 = vunpack.c.h.b16 %v349
          %v735 = vunpack.c.l.b16 %v350
          %v736 = vunpack.c.l.b16 %v351
          %v737 = vunpack.c.h.b16 %v351
          %v738 = vunpack.c.l.b16 %v352
          %v739 = vunpack.c.l.b16 %v353
          %v740 = vunpack.c.h.b16 %v353
          %v741 = vunpack.c.l.b16 %v354
          %v742 = vunpack.c.l.b16 %v355
          %v743 = vunpack.c.h.b16 %v355
          %v744 = vunpack.c.l.b16 %v356
          %v745 = vunpack.c.l.b16 %v357
          %v746 = vunpack.c.h.b16 %v357
          %v747 = vunpack.c.l.b16 %v358
          %v748 = vunpack.c.l.b16 %v359
          %v749 = vunpack.c.h.b16 %v359
          %v750 = vunpack.c.l.b16 %v360
          %v751 = vunpack.c.l.b16 %v361
          %v752 = vunpack.c.h.b16 %v361
          %v753 = vunpack.c.l.b16 %v362
          %v754 = vunpack.c.l.b16 %v363
          %v755 = vunpack.c.h.b16 %v363
          %v756 = vunpack.c.l.b16 %v364
          %v757 = vunpack.c.l.b16 %v365
          %v758 = vunpack.c.h.b16 %v365
          %v759 = vunpack.c.l.b16 %v366
          %v760 = vunpack.c.l.b16 %v367
          %v761 = vunpack.c.h.b16 %v367
          %v762 = vunpack.c.l.b16 %v368
          %v763 = vunpack.c.l.b16 %v369
          %v764 = vunpack.c.h.b16 %v369
          %v765 = vunpack.c.l.b16 %v370
          %v766 = vunpack.c.l.b16 %v371
          %v767 = vunpack.c.h.b16 %v371
          %v768 = vunpack.c.l.b16 %v372
          %v769 = vunpack.c.l.b16 %v373
          %v770 = vunpack.c.h.b16 %v373
          %v771 = vunpack.c.l.b16 %v374
          %v772 = vunpack.c.l.b16 %v375
          %v773 = vunpack.c.h.b16 %v375
          %v774 = vunpack.c.l.b16 %v376
          %v775 = vunpack.c.l.b16 %v377
          %v776 = vunpack.c.h.b16 %v377
          %v777 = vunpack.c.l.b16 %v378
          %v778 = vpack.c.b16 %v733, %v730
          %v779 = vpack.c.b16 %v734, %v731
          %v780 = vpack.c.b16 %v735, %v732
          %v781 = vpack.c.b16 %v739, %v736
          %v782 = vpack.c.b16 %v740, %v737
          %v783 = vpack.c.b16 %v741, %v738
          %v784 = vpack.c.b16 %v745, %v742
          %v785 = vpack.c.b16 %v746, %v743
          %v786 = vpack.c.b16 %v747, %v744
          %v787 = vpack.c.b16 %v751, %v748
          %v788 = vpack.c.b16 %v752, %v749
          %v789 = vpack.c.b16 %v753, %v750
          %v790 = vpack.c.b16 %v757, %v754
          %v791 = vpack.c.b16 %v758, %v755
          %v792 = vpack.c.b16 %v759, %v756
          %v793 = vpack.c.b16 %v763, %v760
          %v794 = vpack.c.b16 %v764, %v761
          %v795 = vpack.c.b16 %v765, %v762
          %v796 = vpack.c.b16 %v769, %v766
          %v797 = vpack.c.b16 %v770, %v767
          %v798 = vpack.c.b16 %v771, %v768
          %v799 = vpack.c.b16 %v775, %v772
          %v800 = vpack.c.b16 %v776, %v773
          %v801 = vpack.c.b16 %v777, %v774
          %826 = vmatprep.subr.bf16.mxu0 %v779
          %827 = vmatpush1.bf16.msra.mxu0 %v778
          %828 = vmatprep.subr.bf16.mxu0 %v782
          %829 = vmatpush1.bf16.msra.mxu0 %v781
          %830 = vmatprep.subr.bf16.mxu0 %v785
          %831 = vmatpush1.bf16.msra.mxu0 %v784
          %832 = vmatprep.subr.bf16.mxu0 %v788
          %833 = vmatpush1.bf16.msra.mxu0 %v787
          %834 = vmatprep.subr.bf16.mxu0 %v791
          %835 = vmatpush1.bf16.msra.mxu0 %v790
          %836 = vmatprep.subr.bf16.mxu0 %v794
          %837 = vmatpush1.bf16.msra.mxu0 %v793
          %838 = vmatprep.subr.bf16.mxu0 %v797
          %839 = vmatpush1.bf16.msra.mxu0 %v796
          %840 = vmatprep.subr.bf16.mxu0 %v800
          %841 = vmatpush1.bf16.msra.mxu0 %v799
          %842 = vmatprep.subr.bf16.mxu0 0
          %843 = vmatpush1.bf16.msra.mxu0 0
          %844 = vmatprep.subr.bf16.mxu0 0
          %845 = vmatpush1.bf16.msra.mxu0 0
          %846 = vmatprep.subr.bf16.mxu0 0
          %847 = vmatpush1.bf16.msra.mxu0 0
          %848 = vmatprep.subr.bf16.mxu0 0
          %849 = vmatpush1.bf16.msra.mxu0 0
          %850 = vmatprep.subr.bf16.mxu0 0
          %851 = vmatpush1.bf16.msra.mxu0 0
          %852 = vmatprep.subr.bf16.mxu0 0
          %853 = vmatpush1.bf16.msra.mxu0 0
          %854 = vmatprep.subr.bf16.mxu0 0
          %855 = vmatpush1.bf16.msra.mxu0 0
          %856 = vmatprep.subr.bf16.mxu0 0
          %857 = vmatpush1.bf16.msra.mxu0 0
          %858 = vmatprep.mubr.bf16.mxu0 0
          %859 = vmatmul.mubr.bf16.gmra.mrb[0].mxu0 %v681
          %v860 = vpop.f32.mrb[0].mxu0
          %v861 = vadd.f32 %v686, %v860
          %v862 = vpop.f32.mrb[0].mxu0
          %v863 = vadd.f32 %v690, %v862
          %v864 = vpop.f32.mrb[0].mxu0
          %v865 = vadd.f32 %v686, %v864
          %v866 = vpop.f32.mrb[0].mxu0
          %v867 = vadd.f32 %v690, %v866
          %868 = vdwg.mxu0
          %869 = vmatprep.subr.bf16.mxu0 0
          %870 = vmatpush1.bf16.msra.mxu0 %v780
          %871 = vmatprep.subr.bf16.mxu0 0
          %872 = vmatpush1.bf16.msra.mxu0 %v783
          %873 = vmatprep.subr.bf16.mxu0 0
          %874 = vmatpush1.bf16.msra.mxu0 %v786
          %875 = vmatprep.subr.bf16.mxu0 0
          %876 = vmatpush1.bf16.msra.mxu0 %v789
          %877 = vmatprep.subr.bf16.mxu0 0
          %878 = vmatpush1.bf16.msra.mxu0 %v792
          %879 = vmatprep.subr.bf16.mxu0 0
          %880 = vmatpush1.bf16.msra.mxu0 %v795
          %881 = vmatprep.subr.bf16.mxu0 0
          %882 = vmatpush1.bf16.msra.mxu0 %v798
          %883 = vmatprep.subr.bf16.mxu0 0
          %884 = vmatpush1.bf16.msra.mxu0 %v801
          %885 = vmatprep.subr.bf16.mxu0 0
          %886 = vmatpush1.bf16.msra.mxu0 0
          %887 = vmatprep.subr.bf16.mxu0 0
          %888 = vmatpush1.bf16.msra.mxu0 0
          %889 = vmatprep.subr.bf16.mxu0 0
          %890 = vmatpush1.bf16.msra.mxu0 0
          %891 = vmatprep.subr.bf16.mxu0 0
          %892 = vmatpush1.bf16.msra.mxu0 0
          %893 = vmatprep.subr.bf16.mxu0 0
          %894 = vmatpush1.bf16.msra.mxu0 0
          %895 = vmatprep.subr.bf16.mxu0 0
          %896 = vmatpush1.bf16.msra.mxu0 0
          %897 = vmatprep.subr.bf16.mxu0 0
          %898 = vmatpush1.bf16.msra.mxu0 0
          %899 = vmatprep.subr.bf16.mxu0 0
          %900 = vmatpush1.bf16.msra.mxu0 0
          %901 = vmatprep.mubr.bf16.mxu0 0
          %902 = vmatmul.mubr.bf16.gmra.mrb[0].mxu0 %v681
          %v903 = vpop.f32.mrb[0].mxu0
          %v904 = vadd.f32 %v694, %v903
          %v905 = vpop.f32.mrb[0].mxu0
          %v906 = vpop.f32.mrb[0].mxu0
          %v907 = vadd.f32 %v694, %v906
          %v908 = vpop.f32.mrb[0].mxu0
          %909 = vdwg.mxu0
          %910 = vst [vmem:[#allocation2] sm:$0xff] %v861
          %911 = vst [vmem:[#allocation2 + $0x8] sm:$0xff] %v863
          %912 = vst [vmem:[#allocation2 + $0x10] sm:$0xff] %v904
          %913 = vst [vmem:[#allocation2 + $0x18] sm:$0xff] %v865
          %914 = vst [vmem:[#allocation2 + $0x20] sm:$0xff] %v867
          %915 = vst [vmem:[#allocation2 + $0x28] sm:$0xff] %v907
        $region52: #{decoder_s2s_forward.1} parent=43 // pred_fallthru
          _
        %v916 = vld [vmem:[%s327] sm:$0x3]
        %v917 = vld [vmem:[#allocation2] sm:$0x3]
        %v918 = vld [vmem:[#allocation2 + $0x8] sm:$0x3]
        %v919 = vld [vmem:[#allocation2 + $0x10] sm:$0x3]
        %v920 = vpack.c.bf16 %v916, %v916
        %v953 = vunpack.c.l.b16 %v379
        %v954 = vunpack.c.h.b16 %v379
        %v955 = vunpack.c.l.b16 %v380
        %v956 = vunpack.c.l.b16 %v381
        %v957 = vunpack.c.h.b16 %v381
        %v958 = vunpack.c.l.b16 %v382
        %v959 = vunpack.c.l.b16 %v383
        %v960 = vunpack.c.h.b16 %v383
        %v961 = vunpack.c.l.b16 %v384
        %v962 = vunpack.c.l.b16 %v385
        %v963 = vunpack.c.h.b16 %v385
        %v964 = vunpack.c.l.b16 %v386
        %v965 = vunpack.c.l.b16 %v387
        %v966 = vunpack.c.h.b16 %v387
        %v967 = vunpack.c.l.b16 %v388
        %v968 = vunpack.c.l.b16 %v389
        %v969 = vunpack.c.h.b16 %v389
        %v970 = vunpack.c.l.b16 %v390
        %v971 = vunpack.c.l.b16 %v391
        %v972 = vunpack.c.h.b16 %v391
        %v973 = vunpack.c.l.b16 %v392
        %v974 = vunpack.c.l.b16 %v393
        %v975 = vunpack.c.h.b16 %v393
        %v976 = vunpack.c.l.b16 %v394
        %v977 = vunpack.c.l.b16 %v395
        %v978 = vunpack.c.h.b16 %v395
        %v979 = vunpack.c.l.b16 %v396
        %v980 = vunpack.c.l.b16 %v397
        %v981 = vunpack.c.h.b16 %v397
        %v982 = vunpack.c.l.b16 %v398
        %v983 = vunpack.c.l.b16 %v399
        %v984 = vunpack.c.h.b16 %v399
        %v985 = vunpack.c.l.b16 %v400
        %v986 = vunpack.c.l.b16 %v401
        %v987 = vunpack.c.h.b16 %v401
        %v988 = vunpack.c.l.b16 %v402
        %v989 = vunpack.c.l.b16 %v403
        %v990 = vunpack.c.h.b16 %v403
        %v991 = vunpack.c.l.b16 %v404
        %v992 = vunpack.c.l.b16 %v405
        %v993 = vunpack.c.h.b16 %v405
        %v994 = vunpack.c.l.b16 %v406
        %v995 = vunpack.c.l.b16 %v407
        %v996 = vunpack.c.h.b16 %v407
        %v997 = vunpack.c.l.b16 %v408
        %v998 = vunpack.c.l.b16 %v409
        %v999 = vunpack.c.h.b16 %v409
        %v1000 = vunpack.c.l.b16 %v410
        %v1001 = vpack.c.b16 %v956, %v953
        %v1002 = vpack.c.b16 %v957, %v954
        %v1003 = vpack.c.b16 %v958, %v955
        %v1004 = vpack.c.b16 %v962, %v959
        %v1005 = vpack.c.b16 %v963, %v960
        %v1006 = vpack.c.b16 %v964, %v961
        %v1007 = vpack.c.b16 %v968, %v965
        %v1008 = vpack.c.b16 %v969, %v966
        %v1009 = vpack.c.b16 %v970, %v967
        %v1010 = vpack.c.b16 %v974, %v971
        %v1011 = vpack.c.b16 %v975, %v972
        %v1012 = vpack.c.b16 %v976, %v973
        %v1013 = vpack.c.b16 %v980, %v977
        %v1014 = vpack.c.b16 %v981, %v978
        %v1015 = vpack.c.b16 %v982, %v979
        %v1016 = vpack.c.b16 %v986, %v983
        %v1017 = vpack.c.b16 %v987, %v984
        %v1018 = vpack.c.b16 %v988, %v985
        %v1019 = vpack.c.b16 %v992, %v989
        %v1020 = vpack.c.b16 %v993, %v990
        %v1021 = vpack.c.b16 %v994, %v991
        %v1022 = vpack.c.b16 %v998, %v995
        %v1023 = vpack.c.b16 %v999, %v996
        %v1024 = vpack.c.b16 %v1000, %v997
        %1049 = vmatprep.subr.bf16.mxu0 %v1002
        %1050 = vmatpush1.bf16.msra.mxu0 %v1001
        %1051 = vmatprep.subr.bf16.mxu0 %v1005
        %1052 = vmatpush1.bf16.msra.mxu0 %v1004
        %1053 = vmatprep.subr.bf16.mxu0 %v1008
        %1054 = vmatpush1.bf16.msra.mxu0 %v1007
        %1055 = vmatprep.subr.bf16.mxu0 %v1011
        %1056 = vmatpush1.bf16.msra.mxu0 %v1010
        %1057 = vmatprep.subr.bf16.mxu0 %v1014
        %1058 = vmatpush1.bf16.msra.mxu0 %v1013
        %1059 = vmatprep.subr.bf16.mxu0 %v1017
        %1060 = vmatpush1.bf16.msra.mxu0 %v1016
        %1061 = vmatprep.subr.bf16.mxu0 %v1020
        %1062 = vmatpush1.bf16.msra.mxu0 %v1019
        %1063 = vmatprep.subr.bf16.mxu0 %v1023
        %1064 = vmatpush1.bf16.msra.mxu0 %v1022
        %1065 = vmatprep.subr.bf16.mxu0 0
        %1066 = vmatpush1.bf16.msra.mxu0 0
        %1067 = vmatprep.subr.bf16.mxu0 0
        %1068 = vmatpush1.bf16.msra.mxu0 0
        %1069 = vmatprep.subr.bf16.mxu0 0
        %1070 = vmatpush1.bf16.msra.mxu0 0
        %1071 = vmatprep.subr.bf16.mxu0 0
        %1072 = vmatpush1.bf16.msra.mxu0 0
        %1073 = vmatprep.subr.bf16.mxu0 0
        %1074 = vmatpush1.bf16.msra.mxu0 0
        %1075 = vmatprep.subr.bf16.mxu0 0
        %1076 = vmatpush1.bf16.msra.mxu0 0
        %1077 = vmatprep.subr.bf16.mxu0 0
        %1078 = vmatpush1.bf16.msra.mxu0 0
        %1079 = vmatprep.subr.bf16.mxu0 0
        %1080 = vmatpush1.bf16.msra.mxu0 0
        %1081 = vmatprep.mubr.bf16.mxu0 0
        %1082 = vmatmul.mubr.bf16.gmra.mrb[0].mxu0 %v920
        %v1083 = vpop.f32.mrb[0].mxu0
        %v1084 = vadd.f32 %v417, %v1083
        %v1085 = vpop.f32.mrb[0].mxu0
        %v1086 = vadd.f32 %v421, %v1085
        %v1087 = vpop.f32.mrb[0].mxu0
        %v1088 = vpop.f32.mrb[0].mxu0
        %1089 = vdwg.mxu0
        %1090 = vmatprep.subr.bf16.mxu0 0
        %1091 = vmatpush1.bf16.msra.mxu0 %v1003
        %1092 = vmatprep.subr.bf16.mxu0 0
        %1093 = vmatpush1.bf16.msra.mxu0 %v1006
        %1094 = vmatprep.subr.bf16.mxu0 0
        %1095 = vmatpush1.bf16.msra.mxu0 %v1009
        %1096 = vmatprep.subr.bf16.mxu0 0
        %1097 = vmatpush1.bf16.msra.mxu0 %v1012
        %1098 = vmatprep.subr.bf16.mxu0 0
        %1099 = vmatpush1.bf16.msra.mxu0 %v1015
        %1100 = vmatprep.subr.bf16.mxu0 0
        %1101 = vmatpush1.bf16.msra.mxu0 %v1018
        %1102 = vmatprep.subr.bf16.mxu0 0
        %1103 = vmatpush1.bf16.msra.mxu0 %v1021
        %1104 = vmatprep.subr.bf16.mxu0 0
        %1105 = vmatpush1.bf16.msra.mxu0 %v1024
        %1106 = vmatprep.subr.bf16.mxu0 0
        %1107 = vmatpush1.bf16.msra.mxu0 0
        %1108 = vmatprep.subr.bf16.mxu0 0
        %1109 = vmatpush1.bf16.msra.mxu0 0
        %1110 = vmatprep.subr.bf16.mxu0 0
        %1111 = vmatpush1.bf16.msra.mxu0 0
        %1112 = vmatprep.subr.bf16.mxu0 0
        %1113 = vmatpush1.bf16.msra.mxu0 0
        %1114 = vmatprep.subr.bf16.mxu0 0
        %1115 = vmatpush1.bf16.msra.mxu0 0
        %1116 = vmatprep.subr.bf16.mxu0 0
        %1117 = vmatpush1.bf16.msra.mxu0 0
        %1118 = vmatprep.subr.bf16.mxu0 0
        %1119 = vmatpush1.bf16.msra.mxu0 0
        %1120 = vmatprep.subr.bf16.mxu0 0
        %1121 = vmatpush1.bf16.msra.mxu0 0
        %1122 = vmatprep.mubr.bf16.mxu0 0
        %1123 = vmatmul.mubr.bf16.gmra.mrb[0].mxu0 %v920
        %v1124 = vpop.f32.mrb[0].mxu0
        %v1125 = vadd.f32 %v425, %v1124
        %v1126 = vpop.f32.mrb[0].mxu0
        %v1127 = vpop.f32.mrb[0].mxu0
        %v1128 = vpop.f32.mrb[0].mxu0
        %1129 = vdwg.mxu0
        %v1130 = vadd.f32 %v917, %v1084
        %v1131 = vxor.u32 %v1130, 2147483648
        %v1132 = vmul.f32 %v1131, 1.442695
        %v1133 = vpow.pop %v1132
        %v1134 = vadd.f32 %v1133, 1.0
        %v1135 = vrcp.pop %v1134
        %v1136 = vmul.f32 1.0, %v1135
        %v1137 = vadd.f32 %v918, %v1086
        %v1138 = vxor.u32 %v1137, 2147483648
        %v1139 = vmul.f32 %v1138, 1.442695
        %v1140 = vpow.pop %v1139
        %v1141 = vadd.f32 %v1140, 1.0
        %v1142 = vrcp.pop %v1141
        %v1143 = vmul.f32 1.0, %v1142
        %v1144 = vmul.f32 %v1136, %v1125
        %v1145 = vadd.f32 %v919, %v1144
        %v1146 = vtanh.pop %v1145
        %v1147 = vsub.f32 1.0, %v1143
        %v1148 = vmul.f32 %v1147, %v1146
        %v1149 = vmul.f32 %v1143, %v916
        %v1150 = vadd.f32 %v1148, %v1149
        %1151 = vst [vmem:[%s6] sm:$0x3] %v1150
        %v1152 = vld [vmem:[#allocation2] sm:$0xc]
        %v1153 = vld [vmem:[#allocation2 + $0x8] sm:$0xc]
        %v1154 = vld [vmem:[#allocation2 + $0x10] sm:$0xc]
        %v1155 = vpack.c.bf16 %v1150, %v1150
        %1156 = vmatprep.subr.bf16.mxu0 %v1002
        %1157 = vmatpush1.bf16.msra.mxu0 %v1001
        %1158 = vmatprep.subr.bf16.mxu0 %v1005
        %1159 = vmatpush1.bf16.msra.mxu0 %v1004
        %1160 = vmatprep.subr.bf16.mxu0 %v1008
        %1161 = vmatpush1.bf16.msra.mxu0 %v1007
        %1162 = vmatprep.subr.bf16.mxu0 %v1011
        %1163 = vmatpush1.bf16.msra.mxu0 %v1010
        %1164 = vmatprep.subr.bf16.mxu0 %v1014
        %1165 = vmatpush1.bf16.msra.mxu0 %v1013
        %1166 = vmatprep.subr.bf16.mxu0 %v1017
        %1167 = vmatpush1.bf16.msra.mxu0 %v1016
        %1168 = vmatprep.subr.bf16.mxu0 %v1020
        %1169 = vmatpush1.bf16.msra.mxu0 %v1019
        %1170 = vmatprep.subr.bf16.mxu0 %v1023
        %1171 = vmatpush1.bf16.msra.mxu0 %v1022
        %1172 = vmatprep.subr.bf16.mxu0 0
        %1173 = vmatpush1.bf16.msra.mxu0 0
        %1174 = vmatprep.subr.bf16.mxu0 0
        %1175 = vmatpush1.bf16.msra.mxu0 0
        %1176 = vmatprep.subr.bf16.mxu0 0
        %1177 = vmatpush1.bf16.msra.mxu0 0
        %1178 = vmatprep.subr.bf16.mxu0 0
        %1179 = vmatpush1.bf16.msra.mxu0 0
        %1180 = vmatprep.subr.bf16.mxu0 0
        %1181 = vmatpush1.bf16.msra.mxu0 0
        %1182 = vmatprep.subr.bf16.mxu0 0
        %1183 = vmatpush1.bf16.msra.mxu0 0
        %1184 = vmatprep.subr.bf16.mxu0 0
        %1185 = vmatpush1.bf16.msra.mxu0 0
        %1186 = vmatprep.subr.bf16.mxu0 0
        %1187 = vmatpush1.bf16.msra.mxu0 0
        %1188 = vmatprep.mubr.bf16.mxu0 0
        %1189 = vmatmul.mubr.bf16.gmra.mrb[0].mxu0 %v1155
        %v1190 = vpop.f32.mrb[0].mxu0
        %v1191 = vadd.f32 %v417, %v1190
        %v1192 = vpop.f32.mrb[0].mxu0
        %v1193 = vadd.f32 %v421, %v1192
        %v1194 = vpop.f32.mrb[0].mxu0
        %v1195 = vpop.f32.mrb[0].mxu0
        %1196 = vdwg.mxu0
        %1197 = vmatprep.subr.bf16.mxu0 0
        %1198 = vmatpush1.bf16.msra.mxu0 %v1003
        %1199 = vmatprep.subr.bf16.mxu0 0
        %1200 = vmatpush1.bf16.msra.mxu0 %v1006
        %1201 = vmatprep.subr.bf16.mxu0 0
        %1202 = vmatpush1.bf16.msra.mxu0 %v1009
        %1203 = vmatprep.subr.bf16.mxu0 0
        %1204 = vmatpush1.bf16.msra.mxu0 %v1012
        %1205 = vmatprep.subr.bf16.mxu0 0
        %1206 = vmatpush1.bf16.msra.mxu0 %v1015
        %1207 = vmatprep.subr.bf16.mxu0 0
        %1208 = vmatpush1.bf16.msra.mxu0 %v1018
        %1209 = vmatprep.subr.bf16.mxu0 0
        %1210 = vmatpush1.bf16.msra.mxu0 %v1021
        %1211 = vmatprep.subr.bf16.mxu0 0
        %1212 = vmatpush1.bf16.msra.mxu0 %v1024
        %1213 = vmatprep.subr.bf16.mxu0 0
        %1214 = vmatpush1.bf16.msra.mxu0 0
        %1215 = vmatprep.subr.bf16.mxu0 0
        %1216 = vmatpush1.bf16.msra.mxu0 0
        %1217 = vmatprep.subr.bf16.mxu0 0
        %1218 = vmatpush1.bf16.msra.mxu0 0
        %1219 = vmatprep.subr.bf16.mxu0 0
        %1220 = vmatpush1.bf16.msra.mxu0 0
        %1221 = vmatprep.subr.bf16.mxu0 0
        %1222 = vmatpush1.bf16.msra.mxu0 0
        %1223 = vmatprep.subr.bf16.mxu0 0
        %1224 = vmatpush1.bf16.msra.mxu0 0
        %1225 = vmatprep.subr.bf16.mxu0 0
        %1226 = vmatpush1.bf16.msra.mxu0 0
        %1227 = vmatprep.subr.bf16.mxu0 0
        %1228 = vmatpush1.bf16.msra.mxu0 0
        %1229 = vmatprep.mubr.bf16.mxu0 0
        %1230 = vmatmul.mubr.bf16.gmra.mrb[0].mxu0 %v1155
        %v1231 = vpop.f32.mrb[0].mxu0
        %v1232 = vadd.f32 %v425, %v1231
        %v1233 = vpop.f32.mrb[0].mxu0
        %v1234 = vpop.f32.mrb[0].mxu0
        %v1235 = vpop.f32.mrb[0].mxu0
        %1236 = vdwg.mxu0
        %v1238 = vrot.slane %v1191, 6
        %v1240 = vadd.f32 %v1152, %v1238
        %v1241 = vxor.u32 %v1240, 2147483648
        %v1242 = vmul.f32 %v1241, 1.442695
        %v1243 = vpow.pop %v1242
        %v1244 = vadd.f32 %v1243, 1.0
        %v1245 = vrcp.pop %v1244
        %v1246 = vmul.f32 1.0, %v1245
        %v1248 = vrot.slane %v1193, 6
        %v1250 = vadd.f32 %v1153, %v1248
        %v1251 = vxor.u32 %v1250, 2147483648
        %v1252 = vmul.f32 %v1251, 1.442695
        %v1253 = vpow.pop %v1252
        %v1254 = vadd.f32 %v1253, 1.0
        %v1255 = vrcp.pop %v1254
        %v1256 = vmul.f32 1.0, %v1255
        %v1258 = vrot.slane %v1232, 6
        %v1260 = vmul.f32 %v1246, %v1258
        %v1261 = vadd.f32 %v1154, %v1260
        %v1262 = vtanh.pop %v1261
        %v1263 = vsub.f32 1.0, %v1256
        %v1264 = vmul.f32 %v1263, %v1262
        %v1266 = vrot.slane %v1150, 6
        %v1268 = vmul.f32 %v1256, %v1266
        %v1269 = vadd.f32 %v1264, %v1268
        %1270 = vst [vmem:[%s6] sm:$0xc] %v1269
        %v1271 = vld [vmem:[#allocation2] sm:$0x30]
        %v1272 = vld [vmem:[#allocation2 + $0x8] sm:$0x30]
        %v1273 = vld [vmem:[#allocation2 + $0x10] sm:$0x30]
        %v1274 = vpack.c.bf16 %v1269, %v1269
        %v1276 = vrot.slane %v1274, 1
        %1278 = vmatprep.subr.bf16.mxu0 %v1002
        %1279 = vmatpush1.bf16.msra.mxu0 %v1001
        %1280 = vmatprep.subr.bf16.mxu0 %v1005
        %1281 = vmatpush1.bf16.msra.mxu0 %v1004
        %1282 = vmatprep.subr.bf16.mxu0 %v1008
        %1283 = vmatpush1.bf16.msra.mxu0 %v1007
        %1284 = vmatprep.subr.bf16.mxu0 %v1011
        %1285 = vmatpush1.bf16.msra.mxu0 %v1010
        %1286 = vmatprep.subr.bf16.mxu0 %v1014
        %1287 = vmatpush1.bf16.msra.mxu0 %v1013
        %1288 = vmatprep.subr.bf16.mxu0 %v1017
        %1289 = vmatpush1.bf16.msra.mxu0 %v1016
        %1290 = vmatprep.subr.bf16.mxu0 %v1020
        %1291 = vmatpush1.bf16.msra.mxu0 %v1019
        %1292 = vmatprep.subr.bf16.mxu0 %v1023
        %1293 = vmatpush1.bf16.msra.mxu0 %v1022
        %1294 = vmatprep.subr.bf16.mxu0 0
        %1295 = vmatpush1.bf16.msra.mxu0 0
        %1296 = vmatprep.subr.bf16.mxu0 0
        %1297 = vmatpush1.bf16.msra.mxu0 0
        %1298 = vmatprep.subr.bf16.mxu0 0
        %1299 = vmatpush1.bf16.msra.mxu0 0
        %1300 = vmatprep.subr.bf16.mxu0 0
        %1301 = vmatpush1.bf16.msra.mxu0 0
        %1302 = vmatprep.subr.bf16.mxu0 0
        %1303 = vmatpush1.bf16.msra.mxu0 0
        %1304 = vmatprep.subr.bf16.mxu0 0
        %1305 = vmatpush1.bf16.msra.mxu0 0
        %1306 = vmatprep.subr.bf16.mxu0 0
        %1307 = vmatpush1.bf16.msra.mxu0 0
        %1308 = vmatprep.subr.bf16.mxu0 0
        %1309 = vmatpush1.bf16.msra.mxu0 0
        %1310 = vmatprep.mubr.bf16.mxu0 0
        %1311 = vmatmul.mubr.bf16.gmra.mrb[0].mxu0 %v1276
        %v1312 = vpop.f32.mrb[0].mxu0
        %v1313 = vadd.f32 %v417, %v1312
        %v1314 = vpop.f32.mrb[0].mxu0
        %v1315 = vadd.f32 %v421, %v1314
        %v1316 = vpop.f32.mrb[0].mxu0
        %v1317 = vpop.f32.mrb[0].mxu0
        %1318 = vdwg.mxu0
        %1319 = vmatprep.subr.bf16.mxu0 0
        %1320 = vmatpush1.bf16.msra.mxu0 %v1003
        %1321 = vmatprep.subr.bf16.mxu0 0
        %1322 = vmatpush1.bf16.msra.mxu0 %v1006
        %1323 = vmatprep.subr.bf16.mxu0 0
        %1324 = vmatpush1.bf16.msra.mxu0 %v1009
        %1325 = vmatprep.subr.bf16.mxu0 0
        %1326 = vmatpush1.bf16.msra.mxu0 %v1012
        %1327 = vmatprep.subr.bf16.mxu0 0
        %1328 = vmatpush1.bf16.msra.mxu0 %v1015
        %1329 = vmatprep.subr.bf16.mxu0 0
        %1330 = vmatpush1.bf16.msra.mxu0 %v1018
        %1331 = vmatprep.subr.bf16.mxu0 0
        %1332 = vmatpush1.bf16.msra.mxu0 %v1021
        %1333 = vmatprep.subr.bf16.mxu0 0
        %1334 = vmatpush1.bf16.msra.mxu0 %v1024
        %1335 = vmatprep.subr.bf16.mxu0 0
        %1336 = vmatpush1.bf16.msra.mxu0 0
        %1337 = vmatprep.subr.bf16.mxu0 0
        %1338 = vmatpush1.bf16.msra.mxu0 0
        %1339 = vmatprep.subr.bf16.mxu0 0
        %1340 = vmatpush1.bf16.msra.mxu0 0
        %1341 = vmatprep.subr.bf16.mxu0 0
        %1342 = vmatpush1.bf16.msra.mxu0 0
        %1343 = vmatprep.subr.bf16.mxu0 0
        %1344 = vmatpush1.bf16.msra.mxu0 0
        %1345 = vmatprep.subr.bf16.mxu0 0
        %1346 = vmatpush1.bf16.msra.mxu0 0
        %1347 = vmatprep.subr.bf16.mxu0 0
        %1348 = vmatpush1.bf16.msra.mxu0 0
        %1349 = vmatprep.subr.bf16.mxu0 0
        %1350 = vmatpush1.bf16.msra.mxu0 0
        %1351 = vmatprep.mubr.bf16.mxu0 0
        %1352 = vmatmul.mubr.bf16.gmra.mrb[0].mxu0 %v1276
        %v1353 = vpop.f32.mrb[0].mxu0
        %v1354 = vadd.f32 %v425, %v1353
        %v1355 = vpop.f32.mrb[0].mxu0
        %v1356 = vpop.f32.mrb[0].mxu0
        %v1357 = vpop.f32.mrb[0].mxu0
        %1358 = vdwg.mxu0
        %v1360 = vrot.slane %v1313, 4
        %v1362 = vadd.f32 %v1271, %v1360
        %v1363 = vxor.u32 %v1362, 2147483648
        %v1364 = vmul.f32 %v1363, 1.442695
        %v1365 = vpow.pop %v1364
        %v1366 = vadd.f32 %v1365, 1.0
        %v1367 = vrcp.pop %v1366
        %v1368 = vmul.f32 1.0, %v1367
        %v1370 = vrot.slane %v1315, 4
        %v1372 = vadd.f32 %v1272, %v1370
        %v1373 = vxor.u32 %v1372, 2147483648
        %v1374 = vmul.f32 %v1373, 1.442695
        %v1375 = vpow.pop %v1374
        %v1376 = vadd.f32 %v1375, 1.0
        %v1377 = vrcp.pop %v1376
        %v1378 = vmul.f32 1.0, %v1377
        %v1380 = vrot.slane %v1354, 4
        %v1382 = vmul.f32 %v1368, %v1380
        %v1383 = vadd.f32 %v1273, %v1382
        %v1384 = vtanh.pop %v1383
        %v1385 = vsub.f32 1.0, %v1378
        %v1386 = vmul.f32 %v1385, %v1384
        %v1388 = vrot.slane %v1269, 6
        %v1390 = vmul.f32 %v1378, %v1388
        %v1391 = vadd.f32 %v1386, %v1390
        %1392 = vst [vmem:[%s6] sm:$0x30] %v1391
        %v1393 = vld [vmem:[#allocation2] sm:$0xc0]
        %v1394 = vld [vmem:[#allocation2 + $0x8] sm:$0xc0]
        %v1395 = vld [vmem:[#allocation2 + $0x10] sm:$0xc0]
        %v1396 = vpack.c.bf16 %v1391, %v1391
        %v1398 = vrot.slane %v1396, 2
        %1400 = vmatprep.subr.bf16.mxu0 %v1002
        %1401 = vmatpush1.bf16.msra.mxu0 %v1001
        %1402 = vmatprep.subr.bf16.mxu0 %v1005
        %1403 = vmatpush1.bf16.msra.mxu0 %v1004
        %1404 = vmatprep.subr.bf16.mxu0 %v1008
        %1405 = vmatpush1.bf16.msra.mxu0 %v1007
        %1406 = vmatprep.subr.bf16.mxu0 %v1011
        %1407 = vmatpush1.bf16.msra.mxu0 %v1010
        %1408 = vmatprep.subr.bf16.mxu0 %v1014
        %1409 = vmatpush1.bf16.msra.mxu0 %v1013
        %1410 = vmatprep.subr.bf16.mxu0 %v1017
        %1411 = vmatpush1.bf16.msra.mxu0 %v1016
        %1412 = vmatprep.subr.bf16.mxu0 %v1020
        %1413 = vmatpush1.bf16.msra.mxu0 %v1019
        %1414 = vmatprep.subr.bf16.mxu0 %v1023
        %1415 = vmatpush1.bf16.msra.mxu0 %v1022
        %1416 = vmatprep.subr.bf16.mxu0 0
        %1417 = vmatpush1.bf16.msra.mxu0 0
        %1418 = vmatprep.subr.bf16.mxu0 0
        %1419 = vmatpush1.bf16.msra.mxu0 0
        %1420 = vmatprep.subr.bf16.mxu0 0
        %1421 = vmatpush1.bf16.msra.mxu0 0
        %1422 = vmatprep.subr.bf16.mxu0 0
        %1423 = vmatpush1.bf16.msra.mxu0 0
        %1424 = vmatprep.subr.bf16.mxu0 0
        %1425 = vmatpush1.bf16.msra.mxu0 0
        %1426 = vmatprep.subr.bf16.mxu0 0
        %1427 = vmatpush1.bf16.msra.mxu0 0
        %1428 = vmatprep.subr.bf16.mxu0 0
        %1429 = vmatpush1.bf16.msra.mxu0 0
        %1430 = vmatprep.subr.bf16.mxu0 0
        %1431 = vmatpush1.bf16.msra.mxu0 0
        %1432 = vmatprep.mubr.bf16.mxu0 0
        %1433 = vmatmul.mubr.bf16.gmra.mrb[0].mxu0 %v1398
        %v1434 = vpop.f32.mrb[0].mxu0
        %v1435 = vadd.f32 %v417, %v1434
        %v1436 = vpop.f32.mrb[0].mxu0
        %v1437 = vadd.f32 %v421, %v1436
        %v1438 = vpop.f32.mrb[0].mxu0
        %v1439 = vpop.f32.mrb[0].mxu0
        %1440 = vdwg.mxu0
        %1441 = vmatprep.subr.bf16.mxu0 0
        %1442 = vmatpush1.bf16.msra.mxu0 %v1003
        %1443 = vmatprep.subr.bf16.mxu0 0
        %1444 = vmatpush1.bf16.msra.mxu0 %v1006
        %1445 = vmatprep.subr.bf16.mxu0 0
        %1446 = vmatpush1.bf16.msra.mxu0 %v1009
        %1447 = vmatprep.subr.bf16.mxu0 0
        %1448 = vmatpush1.bf16.msra.mxu0 %v1012
        %1449 = vmatprep.subr.bf16.mxu0 0
        %1450 = vmatpush1.bf16.msra.mxu0 %v1015
        %1451 = vmatprep.subr.bf16.mxu0 0
        %1452 = vmatpush1.bf16.msra.mxu0 %v1018
        %1453 = vmatprep.subr.bf16.mxu0 0
        %1454 = vmatpush1.bf16.msra.mxu0 %v1021
        %1455 = vmatprep.subr.bf16.mxu0 0
        %1456 = vmatpush1.bf16.msra.mxu0 %v1024
        %1457 = vmatprep.subr.bf16.mxu0 0
        %1458 = vmatpush1.bf16.msra.mxu0 0
        %1459 = vmatprep.subr.bf16.mxu0 0
        %1460 = vmatpush1.bf16.msra.mxu0 0
        %1461 = vmatprep.subr.bf16.mxu0 0
        %1462 = vmatpush1.bf16.msra.mxu0 0
        %1463 = vmatprep.subr.bf16.mxu0 0
        %1464 = vmatpush1.bf16.msra.mxu0 0
        %1465 = vmatprep.subr.bf16.mxu0 0
        %1466 = vmatpush1.bf16.msra.mxu0 0
        %1467 = vmatprep.subr.bf16.mxu0 0
        %1468 = vmatpush1.bf16.msra.mxu0 0
        %1469 = vmatprep.subr.bf16.mxu0 0
        %1470 = vmatpush1.bf16.msra.mxu0 0
        %1471 = vmatprep.subr.bf16.mxu0 0
        %1472 = vmatpush1.bf16.msra.mxu0 0
        %1473 = vmatprep.mubr.bf16.mxu0 0
        %1474 = vmatmul.mubr.bf16.gmra.mrb[0].mxu0 %v1398
        %v1475 = vpop.f32.mrb[0].mxu0
        %v1476 = vadd.f32 %v425, %v1475
        %v1477 = vpop.f32.mrb[0].mxu0
        %v1478 = vpop.f32.mrb[0].mxu0
        %v1479 = vpop.f32.mrb[0].mxu0
        %1480 = vdwg.mxu0
        %v1482 = vrot.slane %v1435, 2
        %v1484 = vadd.f32 %v1393, %v1482
        %v1485 = vxor.u32 %v1484, 2147483648
        %v1486 = vmul.f32 %v1485, 1.442695
        %v1487 = vpow.pop %v1486
        %v1488 = vadd.f32 %v1487, 1.0
        %v1489 = vrcp.pop %v1488
        %v1490 = vmul.f32 1.0, %v1489
        %v1492 = vrot.slane %v1437, 2
        %v1494 = vadd.f32 %v1394, %v1492
        %v1495 = vxor.u32 %v1494, 2147483648
        %v1496 = vmul.f32 %v1495, 1.442695
        %v1497 = vpow.pop %v1496
        %v1498 = vadd.f32 %v1497, 1.0
        %v1499 = vrcp.pop %v1498
        %v1500 = vmul.f32 1.0, %v1499
        %v1502 = vrot.slane %v1476, 2
        %v1504 = vmul.f32 %v1490, %v1502
        %v1505 = vadd.f32 %v1395, %v1504
        %v1506 = vtanh.pop %v1505
        %v1507 = vsub.f32 1.0, %v1500
        %v1508 = vmul.f32 %v1507, %v1506
        %v1510 = vrot.slane %v1391, 6
        %v1512 = vmul.f32 %v1500, %v1510
        %v1513 = vadd.f32 %v1508, %v1512
        %1514 = vst [vmem:[%s6] sm:$0xc0] %v1513
        %v1515 = vld [vmem:[#allocation2 + $0x18] sm:$0x3]
        %v1516 = vld [vmem:[#allocation2 + $0x20] sm:$0x3]
        %v1517 = vld [vmem:[#allocation2 + $0x28] sm:$0x3]
        %v1518 = vpack.c.bf16 %v1513, %v1513
        %v1520 = vrot.slane %v1518, 3
        %1522 = vmatprep.subr.bf16.mxu0 %v1002
        %1523 = vmatpush1.bf16.msra.mxu0 %v1001
        %1524 = vmatprep.subr.bf16.mxu0 %v1005
        %1525 = vmatpush1.bf16.msra.mxu0 %v1004
        %1526 = vmatprep.subr.bf16.mxu0 %v1008
        %1527 = vmatpush1.bf16.msra.mxu0 %v1007
        %1528 = vmatprep.subr.bf16.mxu0 %v1011
        %1529 = vmatpush1.bf16.msra.mxu0 %v1010
        %1530 = vmatprep.subr.bf16.mxu0 %v1014
        %1531 = vmatpush1.bf16.msra.mxu0 %v1013
        %1532 = vmatprep.subr.bf16.mxu0 %v1017
        %1533 = vmatpush1.bf16.msra.mxu0 %v1016
        %1534 = vmatprep.subr.bf16.mxu0 %v1020
        %1535 = vmatpush1.bf16.msra.mxu0 %v1019
        %1536 = vmatprep.subr.bf16.mxu0 %v1023
        %1537 = vmatpush1.bf16.msra.mxu0 %v1022
        %1538 = vmatprep.subr.bf16.mxu0 0
        %1539 = vmatpush1.bf16.msra.mxu0 0
        %1540 = vmatprep.subr.bf16.mxu0 0
        %1541 = vmatpush1.bf16.msra.mxu0 0
        %1542 = vmatprep.subr.bf16.mxu0 0
        %1543 = vmatpush1.bf16.msra.mxu0 0
        %1544 = vmatprep.subr.bf16.mxu0 0
        %1545 = vmatpush1.bf16.msra.mxu0 0
        %1546 = vmatprep.subr.bf16.mxu0 0
        %1547 = vmatpush1.bf16.msra.mxu0 0
        %1548 = vmatprep.subr.bf16.mxu0 0
        %1549 = vmatpush1.bf16.msra.mxu0 0
        %1550 = vmatprep.subr.bf16.mxu0 0
        %1551 = vmatpush1.bf16.msra.mxu0 0
        %1552 = vmatprep.subr.bf16.mxu0 0
        %1553 = vmatpush1.bf16.msra.mxu0 0
        %1554 = vmatprep.mubr.bf16.mxu0 0
        %1555 = vmatmul.mubr.bf16.gmra.mrb[0].mxu0 %v1520
        %v1556 = vpop.f32.mrb[0].mxu0
        %v1557 = vadd.f32 %v417, %v1556
        %v1558 = vpop.f32.mrb[0].mxu0
        %v1559 = vadd.f32 %v421, %v1558
        %v1560 = vpop.f32.mrb[0].mxu0
        %v1561 = vpop.f32.mrb[0].mxu0
        %1562 = vdwg.mxu0
        %1563 = vmatprep.subr.bf16.mxu0 0
        %1564 = vmatpush1.bf16.msra.mxu0 %v1003
        %1565 = vmatprep.subr.bf16.mxu0 0
        %1566 = vmatpush1.bf16.msra.mxu0 %v1006
        %1567 = vmatprep.subr.bf16.mxu0 0
        %1568 = vmatpush1.bf16.msra.mxu0 %v1009
        %1569 = vmatprep.subr.bf16.mxu0 0
        %1570 = vmatpush1.bf16.msra.mxu0 %v1012
        %1571 = vmatprep.subr.bf16.mxu0 0
        %1572 = vmatpush1.bf16.msra.mxu0 %v1015
        %1573 = vmatprep.subr.bf16.mxu0 0
        %1574 = vmatpush1.bf16.msra.mxu0 %v1018
        %1575 = vmatprep.subr.bf16.mxu0 0
        %1576 = vmatpush1.bf16.msra.mxu0 %v1021
        %1577 = vmatprep.subr.bf16.mxu0 0
        %1578 = vmatpush1.bf16.msra.mxu0 %v1024
        %1579 = vmatprep.subr.bf16.mxu0 0
        %1580 = vmatpush1.bf16.msra.mxu0 0
        %1581 = vmatprep.subr.bf16.mxu0 0
        %1582 = vmatpush1.bf16.msra.mxu0 0
        %1583 = vmatprep.subr.bf16.mxu0 0
        %1584 = vmatpush1.bf16.msra.mxu0 0
        %1585 = vmatprep.subr.bf16.mxu0 0
        %1586 = vmatpush1.bf16.msra.mxu0 0
        %1587 = vmatprep.subr.bf16.mxu0 0
        %1588 = vmatpush1.bf16.msra.mxu0 0
        %1589 = vmatprep.subr.bf16.mxu0 0
        %1590 = vmatpush1.bf16.msra.mxu0 0
        %1591 = vmatprep.subr.bf16.mxu0 0
        %1592 = vmatpush1.bf16.msra.mxu0 0
        %1593 = vmatprep.subr.bf16.mxu0 0
        %1594 = vmatpush1.bf16.msra.mxu0 0
        %1595 = vmatprep.mubr.bf16.mxu0 0
        %1596 = vmatmul.mubr.bf16.gmra.mrb[0].mxu0 %v1520
        %v1597 = vpop.f32.mrb[0].mxu0
        %v1598 = vadd.f32 %v425, %v1597
        %v1599 = vpop.f32.mrb[0].mxu0
        %v1600 = vpop.f32.mrb[0].mxu0
        %v1601 = vpop.f32.mrb[0].mxu0
        %1602 = vdwg.mxu0
        %v1603 = vadd.f32 %v1515, %v1557
        %v1604 = vxor.u32 %v1603, 2147483648
        %v1605 = vmul.f32 %v1604, 1.442695
        %v1606 = vpow.pop %v1605
        %v1607 = vadd.f32 %v1606, 1.0
        %v1608 = vrcp.pop %v1607
        %v1609 = vmul.f32 1.0, %v1608
        %v1610 = vadd.f32 %v1516, %v1559
        %v1611 = vxor.u32 %v1610, 2147483648
        %v1612 = vmul.f32 %v1611, 1.442695
        %v1613 = vpow.pop %v1612
        %v1614 = vadd.f32 %v1613, 1.0
        %v1615 = vrcp.pop %v1614
        %v1616 = vmul.f32 1.0, %v1615
        %v1617 = vmul.f32 %v1609, %v1598
        %v1618 = vadd.f32 %v1517, %v1617
        %v1619 = vtanh.pop %v1618
        %v1620 = vsub.f32 1.0, %v1616
        %v1621 = vmul.f32 %v1620, %v1619
        %v1623 = vrot.slane %v1513, 6
        %v1625 = vmul.f32 %v1616, %v1623
        %v1626 = vadd.f32 %v1621, %v1625
        %1627 = vst [vmem:[%s6 + $0x8] sm:$0x3] %v1626
        %v1628 = vld [vmem:[#allocation2 + $0x18] sm:$0xc]
        %v1629 = vld [vmem:[#allocation2 + $0x20] sm:$0xc]
        %v1630 = vld [vmem:[#allocation2 + $0x28] sm:$0xc]
        %v1631 = vpack.c.bf16 %v1626, %v1626
        %1632 = vmatprep.subr.bf16.mxu0 %v1002
        %1633 = vmatpush1.bf16.msra.mxu0 %v1001
        %1634 = vmatprep.subr.bf16.mxu0 %v1005
        %1635 = vmatpush1.bf16.msra.mxu0 %v1004
        %1636 = vmatprep.subr.bf16.mxu0 %v1008
        %1637 = vmatpush1.bf16.msra.mxu0 %v1007
        %1638 = vmatprep.subr.bf16.mxu0 %v1011
        %1639 = vmatpush1.bf16.msra.mxu0 %v1010
        %1640 = vmatprep.subr.bf16.mxu0 %v1014
        %1641 = vmatpush1.bf16.msra.mxu0 %v1013
        %1642 = vmatprep.subr.bf16.mxu0 %v1017
        %1643 = vmatpush1.bf16.msra.mxu0 %v1016
        %1644 = vmatprep.subr.bf16.mxu0 %v1020
        %1645 = vmatpush1.bf16.msra.mxu0 %v1019
        %1646 = vmatprep.subr.bf16.mxu0 %v1023
        %1647 = vmatpush1.bf16.msra.mxu0 %v1022
        %1648 = vmatprep.subr.bf16.mxu0 0
        %1649 = vmatpush1.bf16.msra.mxu0 0
        %1650 = vmatprep.subr.bf16.mxu0 0
        %1651 = vmatpush1.bf16.msra.mxu0 0
        %1652 = vmatprep.subr.bf16.mxu0 0
        %1653 = vmatpush1.bf16.msra.mxu0 0
        %1654 = vmatprep.subr.bf16.mxu0 0
        %1655 = vmatpush1.bf16.msra.mxu0 0
        %1656 = vmatprep.subr.bf16.mxu0 0
        %1657 = vmatpush1.bf16.msra.mxu0 0
        %1658 = vmatprep.subr.bf16.mxu0 0
        %1659 = vmatpush1.bf16.msra.mxu0 0
        %1660 = vmatprep.subr.bf16.mxu0 0
        %1661 = vmatpush1.bf16.msra.mxu0 0
        %1662 = vmatprep.subr.bf16.mxu0 0
        %1663 = vmatpush1.bf16.msra.mxu0 0
        %1664 = vmatprep.mubr.bf16.mxu0 0
        %1665 = vmatmul.mubr.bf16.gmra.mrb[0].mxu0 %v1631
        %v1666 = vpop.f32.mrb[0].mxu0
        %v1667 = vadd.f32 %v417, %v1666
        %v1668 = vpop.f32.mrb[0].mxu0
        %v1669 = vadd.f32 %v421, %v1668
        %v1670 = vpop.f32.mrb[0].mxu0
        %v1671 = vpop.f32.mrb[0].mxu0
        %1672 = vdwg.mxu0
        %1673 = vmatprep.subr.bf16.mxu0 0
        %1674 = vmatpush1.bf16.msra.mxu0 %v1003
        %1675 = vmatprep.subr.bf16.mxu0 0
        %1676 = vmatpush1.bf16.msra.mxu0 %v1006
        %1677 = vmatprep.subr.bf16.mxu0 0
        %1678 = vmatpush1.bf16.msra.mxu0 %v1009
        %1679 = vmatprep.subr.bf16.mxu0 0
        %1680 = vmatpush1.bf16.msra.mxu0 %v1012
        %1681 = vmatprep.subr.bf16.mxu0 0
        %1682 = vmatpush1.bf16.msra.mxu0 %v1015
        %1683 = vmatprep.subr.bf16.mxu0 0
        %1684 = vmatpush1.bf16.msra.mxu0 %v1018
        %1685 = vmatprep.subr.bf16.mxu0 0
        %1686 = vmatpush1.bf16.msra.mxu0 %v1021
        %1687 = vmatprep.subr.bf16.mxu0 0
        %1688 = vmatpush1.bf16.msra.mxu0 %v1024
        %1689 = vmatprep.subr.bf16.mxu0 0
        %1690 = vmatpush1.bf16.msra.mxu0 0
        %1691 = vmatprep.subr.bf16.mxu0 0
        %1692 = vmatpush1.bf16.msra.mxu0 0
        %1693 = vmatprep.subr.bf16.mxu0 0
        %1694 = vmatpush1.bf16.msra.mxu0 0
        %1695 = vmatprep.subr.bf16.mxu0 0
        %1696 = vmatpush1.bf16.msra.mxu0 0
        %1697 = vmatprep.subr.bf16.mxu0 0
        %1698 = vmatpush1.bf16.msra.mxu0 0
        %1699 = vmatprep.subr.bf16.mxu0 0
        %1700 = vmatpush1.bf16.msra.mxu0 0
        %1701 = vmatprep.subr.bf16.mxu0 0
        %1702 = vmatpush1.bf16.msra.mxu0 0
        %1703 = vmatprep.subr.bf16.mxu0 0
        %1704 = vmatpush1.bf16.msra.mxu0 0
        %1705 = vmatprep.mubr.bf16.mxu0 0
        %1706 = vmatmul.mubr.bf16.gmra.mrb[0].mxu0 %v1631
        %v1707 = vpop.f32.mrb[0].mxu0
        %v1708 = vadd.f32 %v425, %v1707
        %v1709 = vpop.f32.mrb[0].mxu0
        %v1710 = vpop.f32.mrb[0].mxu0
        %v1711 = vpop.f32.mrb[0].mxu0
        %1712 = vdwg.mxu0
        %v1714 = vrot.slane %v1667, 6
        %v1716 = vadd.f32 %v1628, %v1714
        %v1717 = vxor.u32 %v1716, 2147483648
        %v1718 = vmul.f32 %v1717, 1.442695
        %v1719 = vpow.pop %v1718
        %v1720 = vadd.f32 %v1719, 1.0
        %v1721 = vrcp.pop %v1720
        %v1722 = vmul.f32 1.0, %v1721
        %v1724 = vrot.slane %v1669, 6
        %v1726 = vadd.f32 %v1629, %v1724
        %v1727 = vxor.u32 %v1726, 2147483648
        %v1728 = vmul.f32 %v1727, 1.442695
        %v1729 = vpow.pop %v1728
        %v1730 = vadd.f32 %v1729, 1.0
        %v1731 = vrcp.pop %v1730
        %v1732 = vmul.f32 1.0, %v1731
        %v1734 = vrot.slane %v1708, 6
        %v1736 = vmul.f32 %v1722, %v1734
        %v1737 = vadd.f32 %v1630, %v1736
        %v1738 = vtanh.pop %v1737
        %v1739 = vsub.f32 1.0, %v1732
        %v1740 = vmul.f32 %v1739, %v1738
        %v1742 = vrot.slane %v1626, 6
        %v1744 = vmul.f32 %v1732, %v1742
        %v1745 = vadd.f32 %v1740, %v1744
        %1746 = vst [vmem:[%s6 + $0x8] sm:$0xc] %v1745
        %v1747 = vld [vmem:[#allocation2 + $0x18] sm:$0x30]
        %v1748 = vld [vmem:[#allocation2 + $0x20] sm:$0x30]
        %v1749 = vld [vmem:[#allocation2 + $0x28] sm:$0x30]
        %v1750 = vpack.c.bf16 %v1745, %v1745
        %v1752 = vrot.slane %v1750, 1
        %1754 = vmatprep.subr.bf16.mxu0 %v1002
        %1755 = vmatpush1.bf16.msra.mxu0 %v1001
        %1756 = vmatprep.subr.bf16.mxu0 %v1005
        %1757 = vmatpush1.bf16.msra.mxu0 %v1004
        %1758 = vmatprep.subr.bf16.mxu0 %v1008
        %1759 = vmatpush1.bf16.msra.mxu0 %v1007
        %1760 = vmatprep.subr.bf16.mxu0 %v1011
        %1761 = vmatpush1.bf16.msra.mxu0 %v1010
        %1762 = vmatprep.subr.bf16.mxu0 %v1014
        %1763 = vmatpush1.bf16.msra.mxu0 %v1013
        %1764 = vmatprep.subr.bf16.mxu0 %v1017
        %1765 = vmatpush1.bf16.msra.mxu0 %v1016
        %1766 = vmatprep.subr.bf16.mxu0 %v1020
        %1767 = vmatpush1.bf16.msra.mxu0 %v1019
        %1768 = vmatprep.subr.bf16.mxu0 %v1023
        %1769 = vmatpush1.bf16.msra.mxu0 %v1022
        %1770 = vmatprep.subr.bf16.mxu0 0
        %1771 = vmatpush1.bf16.msra.mxu0 0
        %1772 = vmatprep.subr.bf16.mxu0 0
        %1773 = vmatpush1.bf16.msra.mxu0 0
        %1774 = vmatprep.subr.bf16.mxu0 0
        %1775 = vmatpush1.bf16.msra.mxu0 0
        %1776 = vmatprep.subr.bf16.mxu0 0
        %1777 = vmatpush1.bf16.msra.mxu0 0
        %1778 = vmatprep.subr.bf16.mxu0 0
        %1779 = vmatpush1.bf16.msra.mxu0 0
        %1780 = vmatprep.subr.bf16.mxu0 0
        %1781 = vmatpush1.bf16.msra.mxu0 0
        %1782 = vmatprep.subr.bf16.mxu0 0
        %1783 = vmatpush1.bf16.msra.mxu0 0
        %1784 = vmatprep.subr.bf16.mxu0 0
        %1785 = vmatpush1.bf16.msra.mxu0 0
        %1786 = vmatprep.mubr.bf16.mxu0 0
        %1787 = vmatmul.mubr.bf16.gmra.mrb[0].mxu0 %v1752
        %v1788 = vpop.f32.mrb[0].mxu0
        %v1789 = vadd.f32 %v417, %v1788
        %v1790 = vpop.f32.mrb[0].mxu0
        %v1791 = vadd.f32 %v421, %v1790
        %v1792 = vpop.f32.mrb[0].mxu0
        %v1793 = vpop.f32.mrb[0].mxu0
        %1794 = vdwg.mxu0
        %1795 = vmatprep.subr.bf16.mxu0 0
        %1796 = vmatpush1.bf16.msra.mxu0 %v1003
        %1797 = vmatprep.subr.bf16.mxu0 0
        %1798 = vmatpush1.bf16.msra.mxu0 %v1006
        %1799 = vmatprep.subr.bf16.mxu0 0
        %1800 = vmatpush1.bf16.msra.mxu0 %v1009
        %1801 = vmatprep.subr.bf16.mxu0 0
        %1802 = vmatpush1.bf16.msra.mxu0 %v1012
        %1803 = vmatprep.subr.bf16.mxu0 0
        %1804 = vmatpush1.bf16.msra.mxu0 %v1015
        %1805 = vmatprep.subr.bf16.mxu0 0
        %1806 = vmatpush1.bf16.msra.mxu0 %v1018
        %1807 = vmatprep.subr.bf16.mxu0 0
        %1808 = vmatpush1.bf16.msra.mxu0 %v1021
        %1809 = vmatprep.subr.bf16.mxu0 0
        %1810 = vmatpush1.bf16.msra.mxu0 %v1024
        %1811 = vmatprep.subr.bf16.mxu0 0
        %1812 = vmatpush1.bf16.msra.mxu0 0
        %1813 = vmatprep.subr.bf16.mxu0 0
        %1814 = vmatpush1.bf16.msra.mxu0 0
        %1815 = vmatprep.subr.bf16.mxu0 0
        %1816 = vmatpush1.bf16.msra.mxu0 0
        %1817 = vmatprep.subr.bf16.mxu0 0
        %1818 = vmatpush1.bf16.msra.mxu0 0
        %1819 = vmatprep.subr.bf16.mxu0 0
        %1820 = vmatpush1.bf16.msra.mxu0 0
        %1821 = vmatprep.subr.bf16.mxu0 0
        %1822 = vmatpush1.bf16.msra.mxu0 0
        %1823 = vmatprep.subr.bf16.mxu0 0
        %1824 = vmatpush1.bf16.msra.mxu0 0
        %1825 = vmatprep.subr.bf16.mxu0 0
        %1826 = vmatpush1.bf16.msra.mxu0 0
        %1827 = vmatprep.mubr.bf16.mxu0 0
        %1828 = vmatmul.mubr.bf16.gmra.mrb[0].mxu0 %v1752
        %v1829 = vpop.f32.mrb[0].mxu0
        %v1830 = vadd.f32 %v425, %v1829
        %v1831 = vpop.f32.mrb[0].mxu0
        %v1832 = vpop.f32.mrb[0].mxu0
        %v1833 = vpop.f32.mrb[0].mxu0
        %1834 = vdwg.mxu0
        %v1836 = vrot.slane %v1789, 4
        %v1838 = vadd.f32 %v1747, %v1836
        %v1839 = vxor.u32 %v1838, 2147483648
        %v1840 = vmul.f32 %v1839, 1.442695
        %v1841 = vpow.pop %v1840
        %v1842 = vadd.f32 %v1841, 1.0
        %v1843 = vrcp.pop %v1842
        %v1844 = vmul.f32 1.0, %v1843
        %v1846 = vrot.slane %v1791, 4
        %v1848 = vadd.f32 %v1748, %v1846
        %v1849 = vxor.u32 %v1848, 2147483648
        %v1850 = vmul.f32 %v1849, 1.442695
        %v1851 = vpow.pop %v1850
        %v1852 = vadd.f32 %v1851, 1.0
        %v1853 = vrcp.pop %v1852
        %v1854 = vmul.f32 1.0, %v1853
        %v1856 = vrot.slane %v1830, 4
        %v1858 = vmul.f32 %v1844, %v1856
        %v1859 = vadd.f32 %v1749, %v1858
        %v1860 = vtanh.pop %v1859
        %v1861 = vsub.f32 1.0, %v1854
        %v1862 = vmul.f32 %v1861, %v1860
        %v1864 = vrot.slane %v1745, 6
        %v1866 = vmul.f32 %v1854, %v1864
        %v1867 = vadd.f32 %v1862, %v1866
        %1868 = vst [vmem:[%s6 + $0x8] sm:$0x30] %v1867
        %v1869 = vld [vmem:[#allocation2 + $0x18] sm:$0xc0]
        %v1870 = vld [vmem:[#allocation2 + $0x20] sm:$0xc0]
        %v1871 = vld [vmem:[#allocation2 + $0x28] sm:$0xc0]
        %v1872 = vpack.c.bf16 %v1867, %v1867
        %v1874 = vrot.slane %v1872, 2
        %1876 = vmatprep.subr.bf16.mxu0 %v1002
        %1877 = vmatpush1.bf16.msra.mxu0 %v1001
        %1878 = vmatprep.subr.bf16.mxu0 %v1005
        %1879 = vmatpush1.bf16.msra.mxu0 %v1004
        %1880 = vmatprep.subr.bf16.mxu0 %v1008
        %1881 = vmatpush1.bf16.msra.mxu0 %v1007
        %1882 = vmatprep.subr.bf16.mxu0 %v1011
        %1883 = vmatpush1.bf16.msra.mxu0 %v1010
        %1884 = vmatprep.subr.bf16.mxu0 %v1014
        %1885 = vmatpush1.bf16.msra.mxu0 %v1013
        %1886 = vmatprep.subr.bf16.mxu0 %v1017
        %1887 = vmatpush1.bf16.msra.mxu0 %v1016
        %1888 = vmatprep.subr.bf16.mxu0 %v1020
        %1889 = vmatpush1.bf16.msra.mxu0 %v1019
        %1890 = vmatprep.subr.bf16.mxu0 %v1023
        %1891 = vmatpush1.bf16.msra.mxu0 %v1022
        %1892 = vmatprep.subr.bf16.mxu0 0
        %1893 = vmatpush1.bf16.msra.mxu0 0
        %1894 = vmatprep.subr.bf16.mxu0 0
        %1895 = vmatpush1.bf16.msra.mxu0 0
        %1896 = vmatprep.subr.bf16.mxu0 0
        %1897 = vmatpush1.bf16.msra.mxu0 0
        %1898 = vmatprep.subr.bf16.mxu0 0
        %1899 = vmatpush1.bf16.msra.mxu0 0
        %1900 = vmatprep.subr.bf16.mxu0 0
        %1901 = vmatpush1.bf16.msra.mxu0 0
        %1902 = vmatprep.subr.bf16.mxu0 0
        %1903 = vmatpush1.bf16.msra.mxu0 0
        %1904 = vmatprep.subr.bf16.mxu0 0
        %1905 = vmatpush1.bf16.msra.mxu0 0
        %1906 = vmatprep.subr.bf16.mxu0 0
        %1907 = vmatpush1.bf16.msra.mxu0 0
        %1908 = vmatprep.mubr.bf16.mxu0 0
        %1909 = vmatmul.mubr.bf16.gmra.mrb[0].mxu0 %v1874
        %v1910 = vpop.f32.mrb[0].mxu0
        %v1911 = vadd.f32 %v417, %v1910
        %v1912 = vpop.f32.mrb[0].mxu0
        %v1913 = vadd.f32 %v421, %v1912
        %v1914 = vpop.f32.mrb[0].mxu0
        %v1915 = vpop.f32.mrb[0].mxu0
        %1916 = vdwg.mxu0
        %1917 = vmatprep.subr.bf16.mxu0 0
        %1918 = vmatpush1.bf16.msra.mxu0 %v1003
        %1919 = vmatprep.subr.bf16.mxu0 0
        %1920 = vmatpush1.bf16.msra.mxu0 %v1006
        %1921 = vmatprep.subr.bf16.mxu0 0
        %1922 = vmatpush1.bf16.msra.mxu0 %v1009
        %1923 = vmatprep.subr.bf16.mxu0 0
        %1924 = vmatpush1.bf16.msra.mxu0 %v1012
        %1925 = vmatprep.subr.bf16.mxu0 0
        %1926 = vmatpush1.bf16.msra.mxu0 %v1015
        %1927 = vmatprep.subr.bf16.mxu0 0
        %1928 = vmatpush1.bf16.msra.mxu0 %v1018
        %1929 = vmatprep.subr.bf16.mxu0 0
        %1930 = vmatpush1.bf16.msra.mxu0 %v1021
        %1931 = vmatprep.subr.bf16.mxu0 0
        %1932 = vmatpush1.bf16.msra.mxu0 %v1024
        %1933 = vmatprep.subr.bf16.mxu0 0
        %1934 = vmatpush1.bf16.msra.mxu0 0
        %1935 = vmatprep.subr.bf16.mxu0 0
        %1936 = vmatpush1.bf16.msra.mxu0 0
        %1937 = vmatprep.subr.bf16.mxu0 0
        %1938 = vmatpush1.bf16.msra.mxu0 0
        %1939 = vmatprep.subr.bf16.mxu0 0
        %1940 = vmatpush1.bf16.msra.mxu0 0
        %1941 = vmatprep.subr.bf16.mxu0 0
        %1942 = vmatpush1.bf16.msra.mxu0 0
        %1943 = vmatprep.subr.bf16.mxu0 0
        %1944 = vmatpush1.bf16.msra.mxu0 0
        %1945 = vmatprep.subr.bf16.mxu0 0
        %1946 = vmatpush1.bf16.msra.mxu0 0
        %1947 = vmatprep.subr.bf16.mxu0 0
        %1948 = vmatpush1.bf16.msra.mxu0 0
        %1949 = vmatprep.mubr.bf16.mxu0 0
        %1950 = vmatmul.mubr.bf16.gmra.mrb[0].mxu0 %v1874
        %v1951 = vpop.f32.mrb[0].mxu0
        %v1952 = vadd.f32 %v425, %v1951
        %v1953 = vpop.f32.mrb[0].mxu0
        %v1954 = vpop.f32.mrb[0].mxu0
        %v1955 = vpop.f32.mrb[0].mxu0
        %1956 = vdwg.mxu0
        %v1958 = vrot.slane %v1911, 2
        %v1960 = vadd.f32 %v1869, %v1958
        %v1961 = vxor.u32 %v1960, 2147483648
        %v1962 = vmul.f32 %v1961, 1.442695
        %v1963 = vpow.pop %v1962
        %v1964 = vadd.f32 %v1963, 1.0
        %v1965 = vrcp.pop %v1964
        %v1966 = vmul.f32 1.0, %v1965
        %v1968 = vrot.slane %v1913, 2
        %v1970 = vadd.f32 %v1870, %v1968
        %v1971 = vxor.u32 %v1970, 2147483648
        %v1972 = vmul.f32 %v1971, 1.442695
        %v1973 = vpow.pop %v1972
        %v1974 = vadd.f32 %v1973, 1.0
        %v1975 = vrcp.pop %v1974
        %v1976 = vmul.f32 1.0, %v1975
        %v1978 = vrot.slane %v1952, 2
        %v1980 = vmul.f32 %v1966, %v1978
        %v1981 = vadd.f32 %v1871, %v1980
        %v1982 = vtanh.pop %v1981
        %v1983 = vsub.f32 1.0, %v1976
        %v1984 = vmul.f32 %v1983, %v1982
        %v1986 = vrot.slane %v1867, 6
        %v1988 = vmul.f32 %v1976, %v1986
        %v1989 = vadd.f32 %v1984, %v1988
        %1990 = vst [vmem:[%s6 + $0x8] sm:$0xc0] %v1989
        %1991 = vst [vmem:[%s323 - $0x6] sm:$0xc0] %v1989
        %s1992 = sand.u32 %s202, 1
        %s1993 = scalar_lea.sflag [#allocation4], %s1992
        %s1994 = sand.u32 %s202, 1
        %s1995 = smul.addr %s1994, 2
        %s1996 = scalar_lea.vmem [#allocation3], %s1995
        // Predicated region
        $region53: #{decoder_s2s_forward.1} parent=43 // pred_check
          %p1997 = pneg %p186
        $region54: #{decoder_s2s_forward.1} parent=43 // pred_check_branch
          %1999 = sbr.rel (%p1997) target = $region56
        $region55: #{decoder_s2s_forward.1} parent=43 // pred_region
          _
        $region56: #{decoder_s2s_forward.1} parent=43 // pred_fallthru
          _
        // Predicated region
        $region57: #{decoder_s2s_forward.1} parent=43 // pred_check
          %p2000 = pneg %p212
        $region58: #{decoder_s2s_forward.1} parent=43 // pred_check_branch
          %2002 = sbr.rel (%p2000) target = $region60
        $region59: #{decoder_s2s_forward.1} parent=43 // pred_region
          %s2004 = ssub.s32 32, 32
          %2005 = vsyncadd %s1993, %s2004
          %s2006 = smul.addr %s22, 32
          %s2007 = scalar_lea.hbm %s7, %s2006
          %s2009 = sshll.u32 %s1996, 4
          %s2010 = int_to_ptr.vmem [resolvable:$true] %s2009
          %2012 = dma.vmem_to_hbm [thread:$0]  %s2010, 32, %s2007, %s1993
        $region60: #{decoder_s2s_forward.1} parent=43 // pred_fallthru
          _
        // Predicated region
        $region61: #{decoder_s2s_forward.1} parent=43 // pred_check
          %p2013 = pneg %p186
        $region62: #{decoder_s2s_forward.1} parent=43 // pred_check_branch
          %2015 = sbr.rel (%p2013) target = $region64
        $region63: #{decoder_s2s_forward.1} parent=43 // pred_region
          _
        $region64: #{decoder_s2s_forward.1} parent=43 // pred_fallthru
          _
      $region44: #{decoder_s2s_forward.1} parent=5 // pred_fallthru
        _
      %p2016 = scmp.le.s32.totalorder 2, %s17
      // Predicated region
      $region65: #{decoder_s2s_forward.1} parent=5 // pred_check
        %p2017 = pneg %p2016
      $region66: #{decoder_s2s_forward.1} parent=5 // pred_check_branch
        %2019 = sbr.rel (%p2017) target = $region68
      $region67: #{decoder_s2s_forward.1} parent=5 // pred_region
        %s2020 = ssub.s32 %s17, 2
        // Predicated region
        $region69: #{decoder_s2s_forward.1} parent=67 // pred_check
          %p2021 = pneg %p218
        $region70: #{decoder_s2s_forward.1} parent=67 // pred_check_branch
          %2023 = sbr.rel (%p2021) target = $region72
        $region71: #{decoder_s2s_forward.1} parent=67 // pred_region
          %s2024 = sand.u32 %s203, 1
          %s2025 = scalar_lea.sflag [#allocation4], %s2024
          %s2026 = sand.u32 %s203, 1
          %s2027 = smul.addr %s2026, 2
          %s2028 = scalar_lea.vmem [#allocation3], %s2027
          %2029 = dma.done %s2025, 32
        $region72: #{decoder_s2s_forward.1} parent=67 // pred_fallthru
          _
      $region68: #{decoder_s2s_forward.1} parent=5 // pred_fallthru
        _
    $region6: #{decoder_s2s_forward.1} parent=1 // loop_footer
      %s21 = sadd.s32 1, %s17
    $region7: #{decoder_s2s_forward.1} parent=1 // loop_footer_branch
      %16 = sbr.rel target = $region3
    $region8: #{decoder_s2s_forward.1} parent=1 // loop_exit
      _
    %2030 = vsyncpa [#allocation4], 1
    %s2031 = scalar_lea.sflag [#allocation4], 1
    %2032 = vsyncpa %s2031, 1

</llo_original>
